<compile_context>
chip_gen: v7x
topology: tpu7x:2x2x1
jax: 0.10.0
libtpu: 0.0.40
codegen_flags: <defaults>
</compile_context>

<pallas_src>
import functools

import jax
import jax.numpy as jnp
from jax import lax
from jax.experimental import pallas as pl
from jax.experimental.pallas import tpu as pltpu

C_IN = 2048
C_OUT = 256
BN_EPS = 1e-5


def _pool_sum_kernel(x_ref, o_ref, acc_ref, *, hw_total):
    """One (image, Cin-tile, HW-tile) step of the global sum pool.

    x_ref:   (1, cin_tile, hw_tile)  input slab: channels on sublanes, HW on lanes
    o_ref:   (1, cin_tile, 1)        per-channel spatial sum for this group
    acc_ref: (cin_tile, 128)         lane-wide partial-sum scratch (VMEM)
    """
    t = pl.program_id(2)
    hw_tile = x_ref.shape[-1]

    @pl.when(t == 0)
    def _():
        acc_ref[...] = jnp.zeros_like(acc_ref)

    def accumulate(xv):
        # Deferred cross-lane reduce: pure VALU adds of 128-lane-aligned
        # slices into a lane-wide accumulator.  The single XLU cross-lane
        # reduce happens once per (image, Cin-tile) group in the finalize.
        n_full = hw_tile // 128
        rem = hw_tile - n_full * 128
        if n_full > 0:
            total = xv[:, 0:128].astype(jnp.float32)
            for j in range(1, n_full):
                total = total + xv[:, j * 128:(j + 1) * 128].astype(jnp.float32)
            acc_ref[...] += total
        if rem > 0:
            # Only reachable when hw_tile == HW (single spatial tile) and HW
            # is not a multiple of 128: fold the short tail into lane 0.
            tail = jnp.sum(xv[:, n_full * 128:].astype(jnp.float32),
                           axis=-1, keepdims=True)
            acc_ref[:, 0:1] += tail

    if hw_total % hw_tile != 0:
        # Ragged spatial tiling: only the last tile carries padding garbage,
        # so only the last tile pays for the mask (runtime-gated).
        last = pl.num_programs(2) - 1

        @pl.when(t < last)
        def _():
            accumulate(x_ref[0])

        @pl.when(t == last)
        def _():
            pos = t * hw_tile + lax.broadcasted_iota(jnp.int32, (1, hw_tile), 1)
            accumulate(jnp.where(pos < hw_total, x_ref[0],
                                 jnp.zeros_like(x_ref[0])))
    else:
        accumulate(x_ref[0])

    @pl.when(t == pl.num_programs(2) - 1)
    def _():
        # One cross-lane reduce per (image, Cin-tile) group.  The (cin_tile, 1)
        # output is lane-sparse but tiny (8 KB/image); transposing it in-kernel
        # would cost more than the few masked stores it saves.
        o_ref[0] = jnp.sum(acc_ref[...], axis=-1, keepdims=True)


def image_pooling(x_nchw, conv_w, gamma, beta, run_mean, run_var, eps=BN_EPS):
    """x_nchw: (N, 2048, H, W) float32/bfloat16 -> (N, 256, H, W)."""
    N, Cin, H, W = x_nchw.shape
    Cout = conv_w.shape[0]
    HW = H * W

    # ---- Tile selection -----------------------------------------------------
    # Spatial tile: as large as possible (fewer per-step overheads), but keep
    # >= ~4 reduction steps when HW is big so DMA/compute overlap has depth.
    if HW <= 2048:
        hw_tile = HW                      # single tile; full dim is always legal
    else:
        hw_tile = 2048                    # multiple of 128; 8 MiB blocks @ f32
        while hw_tile > 512 and pl.cdiv(HW, hw_tile) < 4:
            hw_tile //= 2
    n_hw = pl.cdiv(HW, hw_tile)
    # Cin tile: 2048 -> 2x1024 keeps a second 'parallel' axis so v7x's two
    # TensorCores are busy even when N == 1; costs nothing on v5e/v6e since
    # the kernel fetches no weights.
    cin_tile = 1024 if (Cin > 1024 and Cin % 1024 == 0) else Cin
    n_c = Cin // cin_tile

    # ---- Streaming global-sum pool (Pallas) ---------------------------------
    x_flat = x_nchw.reshape(N, Cin, HW)   # free reshape of contiguous NCHW

    pooled_sum = pl.pallas_call(
        functools.partial(_pool_sum_kernel, hw_total=HW),
        out_shape=jax.ShapeDtypeStruct((N, Cin, 1), jnp.float32),
        grid_spec=pltpu.PrefetchScalarGridSpec(
            num_scalar_prefetch=0,
            grid=(N, n_c, n_hw),                       # reduction axis last
            in_specs=[
                pl.BlockSpec((1, cin_tile, hw_tile), lambda n, c, t: (n, c, t)),
            ],
            out_specs=pl.BlockSpec((1, cin_tile, 1), lambda n, c, t: (n, c, 0)),
            scratch_shapes=[pltpu.VMEM((cin_tile, 128), jnp.float32)],
        ),
        compiler_params=pltpu.CompilerParams(
            dimension_semantics=("parallel", "parallel", "arbitrary"),
            vmem_limit_bytes=32 * 1024 * 1024,   # ~17.5 MiB used at max tiling
        ),
    )(x_flat)

    pooled_sum = pooled_sum[:, :, 0]                               # (N, Cin)

    # ---- Tiny epilogue in plain JAX (fuses in XLA) ---------------------------
    # Fold BN scale and the 1/HW mean factor into the 1x1-conv weight.
    scale = gamma / jnp.sqrt(run_var + eps)                        # (Cout,)
    w_eff = conv_w.reshape(Cout, Cin) * (scale[:, None] / HW)      # (Cout, Cin)
    bias = beta - run_mean * scale                                 # (Cout,)

    y = pooled_sum @ w_eff.T + bias[None, :]                       # (N, Cout)
    y = jnp.maximum(y, 0.0).astype(x_nchw.dtype)
    # Bilinear upsample of a 1x1 map (align_corners=False) == broadcast.
    return jnp.broadcast_to(y[:, :, None, None], (N, Cout, H, W))


def image_pooling_ref(x_nchw, conv_w, gamma, beta, run_mean, run_var,
                      eps=BN_EPS):
    """Pure-JAX reference for correctness checking."""
    N, Cin, H, W = x_nchw.shape
    Cout = conv_w.shape[0]
    pooled = jnp.mean(x_nchw.astype(jnp.float32), axis=(2, 3))     # (N, Cin)
    y = pooled @ conv_w.reshape(Cout, Cin).T                       # (N, Cout)
    y = (y - run_mean) / jnp.sqrt(run_var + eps) * gamma + beta
    y = jnp.maximum(y, 0.0).astype(x_nchw.dtype)
    return jnp.broadcast_to(y[:, :, None, None], (N, Cout, H, W))


if __name__ == "__main__":
    key = jax.random.PRNGKey(0)
    k_x, k_w, k_g, k_b, k_m, k_v = jax.random.split(key, 6)

    N, H, W = 2, 16, 16
    x = jax.random.normal(k_x, (N, C_IN, H, W), dtype=jnp.float32)

    # Deterministic synthetic parameters (shapes from the module's __init__).
    conv_w = jax.random.normal(k_w, (C_OUT, C_IN, 1, 1), jnp.float32) * 0.02
    gamma = 1.0 + 0.1 * jax.random.normal(k_g, (C_OUT,), jnp.float32)
    beta = 0.05 * jax.random.normal(k_b, (C_OUT,), jnp.float32)
    run_mean = 0.05 * jax.random.normal(k_m, (C_OUT,), jnp.float32)
    run_var = 1.0 + 0.1 * jax.random.uniform(k_v, (C_OUT,), jnp.float32)

    out = image_pooling(x, conv_w, gamma, beta, run_mean, run_var)
    out = jax.block_until_ready(out)

    ref = image_pooling_ref(x, conv_w, gamma, beta, run_mean, run_var)
    assert out.shape == (N, C_OUT, H, W), out.shape
    assert jnp.allclose(out, ref, atol=1e-4, rtol=1e-4), "mismatch vs reference"

    print("KERNEL_OK")
</pallas_src>

<mosaic_0001>
module attributes {stable_mosaic.version = 11 : i64} {
  func.func @_pool_sum_kernel(%arg0: i32, %arg1: i32, %arg2: i32, %arg3: memref<1x1024x256xf32, #tpu.memory_space<vmem>>, %arg4: memref<1x1024x1xf32, #tpu.memory_space<vmem>>, %arg5: memref<1024x128xf32, #tpu.memory_space<vmem>>) attributes {dimension_semantics = [#tpu.dimension_semantics<parallel>, #tpu.dimension_semantics<parallel>, #tpu.dimension_semantics<arbitrary>], iteration_bounds = array<i64: 2, 2, 1>, scalar_prefetch = 0 : i64, scratch_operands = 1 : i64, tpu.core_type = #tpu.core_type<tc>, window_params = [{transform_indices = @transform_0, window_bounds = array<i64: 1, 1024, 256>}, {transform_indices = @transform_1, window_bounds = array<i64: 1, 1024, 1>}]} {
    %c0_i32 = arith.constant 0 : i32
    %0 = arith.cmpi eq, %arg2, %c0_i32 : i32
    %1 = arith.extui %0 : i1 to i32
    %c0_i32_0 = arith.constant 0 : i32
    %2 = arith.cmpi ne, %1, %c0_i32_0 : i32
    scf.if %2 {
      %cst = arith.constant 0.000000e+00 : f32
      %14 = vector.broadcast %cst : f32 to vector<1024x128xf32>
      %c0_9 = arith.constant 0 : index
      %c0_10 = arith.constant 0 : index
      %15 = vector.load %arg5[%c0_9, %c0_10] : memref<1024x128xf32, #tpu.memory_space<vmem>>, vector<1024x128xf32>
      tpu.vector_store %arg5[%c0_9, %c0_10], %14 {strides = array<i32>} : memref<1024x128xf32, #tpu.memory_space<vmem>>, vector<1024x128xf32>,
    } else {
    }
    %c0 = arith.constant 0 : index
    %c0_1 = arith.constant 0 : index
    %c0_2 = arith.constant 0 : index
    %3 = vector.load %arg3[%c0, %c0_1, %c0_2] : memref<1x1024x256xf32, #tpu.memory_space<vmem>>, vector<1x1024x256xf32>
    %4 = vector.shape_cast %3 : vector<1x1024x256xf32> to vector<1024x256xf32>
    %5 = vector.extract_strided_slice %4 {offsets = [0, 0], sizes = [1024, 128], strides = [1, 1]} : vector<1024x256xf32> to vector<1024x128xf32>
    %6 = vector.extract_strided_slice %4 {offsets = [0, 128], sizes = [1024, 128], strides = [1, 1]} : vector<1024x256xf32> to vector<1024x128xf32>
    %7 = arith.addf %5, %6 : vector<1024x128xf32>
    %c0_3 = arith.constant 0 : index
    %c0_4 = arith.constant 0 : index
    %8 = vector.load %arg5[%c0_3, %c0_4] : memref<1024x128xf32, #tpu.memory_space<vmem>>, vector<1024x128xf32>
    %9 = arith.addf %8, %7 : vector<1024x128xf32>
    %c0_5 = arith.constant 0 : index
    %c0_6 = arith.constant 0 : index
    %10 = vector.load %arg5[%c0_5, %c0_6] : memref<1024x128xf32, #tpu.memory_space<vmem>>, vector<1024x128xf32>
    tpu.vector_store %arg5[%c0_5, %c0_6], %9 {strides = array<i32>} : memref<1024x128xf32, #tpu.memory_space<vmem>>, vector<1024x128xf32>,
    %c0_i32_7 = arith.constant 0 : i32
    %11 = arith.cmpi eq, %arg2, %c0_i32_7 : i32
    %12 = arith.extui %11 : i1 to i32
    %c0_i32_8 = arith.constant 0 : i32
    %13 = arith.cmpi ne, %12, %c0_i32_8 : i32
    scf.if %13 {
      %c0_9 = arith.constant 0 : index
      %c0_10 = arith.constant 0 : index
      %14 = vector.load %arg5[%c0_9, %c0_10] : memref<1024x128xf32, #tpu.memory_space<vmem>>, vector<1024x128xf32>
      %cst = arith.constant dense<0.000000e+00> : vector<1024xf32>
      %15 = vector.multi_reduction <add>, %14, %cst [1] : vector<1024x128xf32> to vector<1024xf32>
      %16 = vector.shape_cast %15 : vector<1024xf32> to vector<1024x1xf32>
      %c0_11 = arith.constant 0 : index
      %c0_12 = arith.constant 0 : index
      %c0_13 = arith.constant 0 : index
      %17 = vector.load %arg4[%c0_11, %c0_12, %c0_13] : memref<1x1024x1xf32, #tpu.memory_space<vmem>>, vector<1x1024x1xf32>
      %18 = vector.shape_cast %17 : vector<1x1024x1xf32> to vector<1024x1xf32>
      %19 = vector.shape_cast %16 : vector<1024x1xf32> to vector<1x1024x1xf32>
      tpu.vector_store %arg4[%c0_11, %c0_12, %c0_13], %19 {strides = array<i32>} : memref<1x1024x1xf32, #tpu.memory_space<vmem>>, vector<1x1024x1xf32>,
    } else {
    }
    return
  }
  func.func @transform_0(%arg0: i32, %arg1: i32, %arg2: i32) -> (i32, i32, i32) {
    %c0_i32 = arith.constant 0 : i32
    return %arg0, %arg1, %arg2 : i32, i32, i32
  }
  func.func @transform_1(%arg0: i32, %arg1: i32, %arg2: i32) -> (i32, i32, i32) {
    %c0_i32 = arith.constant 0 : i32
    %c0_i32_0 = arith.constant 0 : i32
    return %arg0, %arg1, %c0_i32 : i32, i32, i32
  }
}

</mosaic_0001>

<llo_original>
// kernel: tpu_custom_call.1
$region0: #{tpu_custom_call.1}
  #allocation0 [shape = 'u32[]', space=smem, size = 0x4, offset = 0x4, fixed_abs, tag = 'smem constant byte address 0x4 - core index']
  #allocation1 [shape = 'u32[144,128]{1,0:T(1,128)}', space=vmem, size = 0x12000, scoped, tag = 'internal scratch']
  #allocation2 [shape = 'f32[1024,128]{1,0:T(8,128)}', space=vmem, size = 0x80000, scoped, tag = 'scratch operand']
  %s0 = inlined_call_operand.hbm [shape: f32[2,2048,256], index: 0, kind: input, shape index: {}]
  %s1 = inlined_call_operand.vmem [shape: f32[2,2048,1], index: 1, kind: output, shape index: {}]
  %s2 = sld [smem:[#allocation0]]
  $region49: #{tpu_custom_call.1} parent=0
    _
  %s4 = ssub.s32 1, %s2
  %s5 = scalar_select 0, %s4, %s2
  $region1: #{tpu_custom_call.1} parent=0
    #allocation3 [shape = 'u8[2097152]{0}', space=vmem, size = 0x200000, scoped, tag = 'input window, operand 0']
    #allocation4 [shape = 's32[2]{0}', space=sflag, size = 0x8, scoped, tag = 'scoped memory for tpu_custom_call.1']
    %6 = vsyncpa [#allocation4], 0
    %s7 = scalar_lea.sflag [#allocation4], 1
    %8 = vsyncpa %s7, 0
    loop: start=0, step=1, limit=6
    $region2: #{tpu_custom_call.1} parent=1 // loop_pre_header
      _
    $region3: #{tpu_custom_call.1} parent=1 // loop_header
      %s10 = sphi 0, %s14
      %p11 = scmp.ge.s32.totalorder %s10, 6
      %s17 = sphi 0, %s36
      %s18 = sphi 0, %s32
      %s19 = sphi 0, %s28
      %s20 = sphi 0, %s17
      %s21 = sphi 0, %s18
      %s22 = sphi 0, %s19
      %s23 = sphi 0, %s20
      %s24 = sphi 0, %s21
      %s25 = sphi 0, %s22
      %s43 = sphi 0, %s45
      %s46 = sphi 0, %s43
      %s47 = sphi 0, %s46
      %s63 = sphi 0, %s47
      %s71 = sphi 0, %s73
      %s74 = sphi 0, %s71
      %s75 = sphi 0, %s74
      %s91 = sphi 0, %s75
    $region4: #{tpu_custom_call.1} parent=1 // loop_header_branch
      %13 = sbr.rel (%p11) target = $region8
    $region5: #{tpu_custom_call.1} parent=1 // loop_body
      %s15 = ssub.s32 %s10, 1
      %s16 = ssub.s32 %s10, 2
      %s26 = sadd.s32 1, %s19
      %p27 = scmp.ge.s32.totalorder %s26, 1
      %s28 = scalar_select %p27, 0, %s26
      %s29 = sadd.s32 1, %s18
      %s30 = scalar_select %p27, %s29, %s18
      %p31 = scmp.ge.s32.totalorder %s30, 2
      %s32 = scalar_select %p31, 0, %s30
      %s33 = sadd.s32 1, %s17
      %s34 = scalar_select %p31, %s33, %s17
      %p35 = scmp.ge.s32.totalorder %s34, 2
      %s36 = scalar_select %p35, 0, %s34
      %s37 = ssub.s32 %s17, %s36
      %s38 = ssub.s32 %s18, %s32
      %s39 = sor.u32 %s37, %s38
      %s40 = ssub.s32 %s19, %s28
      %s41 = sor.u32 %s39, %s40
      %p42 = scmp.eq.s32.totalorder %s41, 0
      %s44 = sadd.s32 %s43, 1
      %s45 = scalar_select %p42, %s43, %s44
      %p48 = pneg %p42
      %p49 = scmp.eq.s32.totalorder %s10, 3
      %p50 = por %p48, %p49
      %p51 = scmp.ne.s32.totalorder %s43, %s46
      %p52 = scmp.eq.s32.totalorder %s10, 0
      %p53 = por %p51, %p52
      %p54 = scmp.ne.s32.totalorder %s43, %s46
      %p55 = scmp.eq.s32.totalorder %s15, 3
      %p56 = por %p54, %p55
      %p57 = scmp.ne.s32.totalorder %s46, %s47
      %p58 = scmp.eq.s32.totalorder %s15, 0
      %p59 = por %p57, %p58
      %p60 = scmp.ne.s32.totalorder %s46, %s47
      %p61 = scmp.eq.s32.totalorder %s16, 3
      %p62 = por %p60, %p61
      %p64 = scmp.ne.s32.totalorder %s47, %s63
      %p65 = scmp.eq.s32.totalorder %s16, 0
      %p66 = por %p64, %p65
      %s67 = ssub.s32 %s17, %s36
      %s68 = ssub.s32 %s18, %s32
      %s69 = sor.u32 %s67, %s68
      %p70 = scmp.eq.s32.totalorder %s69, 0
      %s72 = sadd.s32 %s71, 1
      %s73 = scalar_select %p70, %s71, %s72
      %p76 = pneg %p70
      %p77 = scmp.eq.s32.totalorder %s10, 3
      %p78 = por %p76, %p77
      %p79 = scmp.ne.s32.totalorder %s71, %s74
      %p80 = scmp.eq.s32.totalorder %s10, 0
      %p81 = por %p79, %p80
      %p82 = scmp.ne.s32.totalorder %s71, %s74
      %p83 = scmp.eq.s32.totalorder %s15, 3
      %p84 = por %p82, %p83
      %p85 = scmp.ne.s32.totalorder %s74, %s75
      %p86 = scmp.eq.s32.totalorder %s15, 0
      %p87 = por %p85, %p86
      %p88 = scmp.ne.s32.totalorder %s74, %s75
      %p89 = scmp.eq.s32.totalorder %s16, 3
      %p90 = por %p88, %p89
      %p92 = scmp.ne.s32.totalorder %s75, %s91
      %p93 = scmp.eq.s32.totalorder %s16, 0
      %p94 = por %p92, %p93
      %p95 = scmp.le.s32.totalorder 1, %s10
      %p96 = scmp.lt.s32.totalorder %s10, 5
      %p97 = pnand %p95, %p96
      %p98 = pneg %p97
      // Predicated region
      $region9: #{tpu_custom_call.1} parent=5 // pred_check
        _
      $region10: #{tpu_custom_call.1} parent=5 // pred_check_branch
        %100 = sbr.rel (%p97) target = $region12
      $region11: #{tpu_custom_call.1} parent=5 // pred_region
        %s101 = ssub.s32 %s10, 1
      $region12: #{tpu_custom_call.1} parent=5 // pred_fallthru
        _
      %p102 = scmp.lt.s32.totalorder %s10, 4
      // Predicated region
      $region13: #{tpu_custom_call.1} parent=5 // pred_check
        %p103 = pneg %p102
      $region14: #{tpu_custom_call.1} parent=5 // pred_check_branch
        %105 = sbr.rel (%p103) target = $region16
      $region15: #{tpu_custom_call.1} parent=5 // pred_region
        // Predicated region
        $region17: #{tpu_custom_call.1} parent=15 // pred_check
          %p106 = pneg %p53
        $region18: #{tpu_custom_call.1} parent=15 // pred_check_branch
          %108 = sbr.rel (%p106) target = $region20
        $region19: #{tpu_custom_call.1} parent=15 // pred_region
          %s109 = sand.u32 %s43, 1
          %s110 = scalar_lea.sflag [#allocation4], %s109
          %s111 = sand.u32 %s43, 1
          %s112 = smul.addr %s111, 2048
          %s113 = scalar_lea.vmem [#allocation3], %s112
          %s114 = smul.u32 128, %s18
          %s115 = smul.u32 2, %s19
          %s117 = ssub.s32 32768, 32768
          %118 = vsyncadd %s110, %s117
          %s119 = smul.addr %s114, 2
          %s120 = sadd.s32 %s115, %s119
          %s121 = smul.addr %s17, 512
          %s122 = sadd.s32 %s120, %s121
          %s123 = smul.addr %s122, 128
          %s124 = scalar_lea.hbm %s0, %s123
          %s125 = sshll.u32 %s113, 4
          %s126 = int_to_ptr.vmem [resolvable:$true] %s125
          %131 = dma.hbm_to_vmem [thread:$0]  %s124, 32768, %s126, %s110, 256, 256, 16
        $region20: #{tpu_custom_call.1} parent=15 // pred_fallthru
          _
      $region16: #{tpu_custom_call.1} parent=5 // pred_fallthru
        _
      %p132 = scmp.le.s32.totalorder 1, %s10
      %p133 = scmp.lt.s32.totalorder %s10, 5
      %p134 = pnand %p132, %p133
      %p135 = pneg %p134
      // Predicated region
      $region21: #{tpu_custom_call.1} parent=5 // pred_check
        _
      $region22: #{tpu_custom_call.1} parent=5 // pred_check_branch
        %137 = sbr.rel (%p134) target = $region24
      $region23: #{tpu_custom_call.1} parent=5 // pred_region
        %s138 = ssub.s32 %s10, 1
        %s139 = sand.u32 %s46, 1
        %s140 = scalar_lea.sflag [#allocation4], %s139
        %s141 = sand.u32 %s46, 1
        %s142 = smul.addr %s141, 2048
        %s143 = scalar_lea.vmem [#allocation3], %s142
        // Predicated region
        $region25: #{tpu_custom_call.1} parent=23 // pred_check
          %p144 = pneg %p59
        $region26: #{tpu_custom_call.1} parent=23 // pred_check_branch
          %146 = sbr.rel (%p144) target = $region28
        $region27: #{tpu_custom_call.1} parent=23 // pred_region
          %147 = dma.done %s140, 32768
        $region28: #{tpu_custom_call.1} parent=23 // pred_fallthru
          _
        %s148 = sand.u32 %s46, 1
        %s149 = scalar_lea.sflag [#allocation4], %s148
        %s150 = sand.u32 %s46, 1
        %s151 = smul.addr %s150, 2048
        %s152 = scalar_lea.vmem [#allocation3], %s151
        %p153 = pneg %p59
        %p154 = pneg %p56
        %p155 = pneg %p87
        %p156 = pneg %p84
        %s157 = smul.u32 128, %s21
        %p158 = scmp.lt.s32.totalorder %s20, 1
        %s159 = scalar_select %p158, %s20, 1
        %p160 = scmp.lt.s32.totalorder %s157, 255
        %s161 = scalar_select %p160, %s157, 255
        %s162 = smul.addr %s159, 256
        %s163 = sadd.s32 %s161, %s162
        %s164 = smul.addr %s163, 8
        %s165 = scalar_lea.vmem %s1, %s164
        %s166 = smul.u32 128, %s21
        %s167 = smul.u32 2, %s22
        %s168 = smul.u32 128, %s21
        %p169 = scmp.lt.s32.totalorder %s20, 1
        %s170 = scalar_select %p169, %s20, 1
        %p171 = scmp.lt.s32.totalorder %s168, 255
        %s172 = scalar_select %p171, %s168, 255
        %s173 = smul.addr %s170, 256
        %s174 = sadd.s32 %s172, %s173
        %s175 = smul.addr %s174, 8
        %s176 = scalar_lea.vmem %s1, %s175
        %s177 = smul.u32 128, %s21
        %p178 = scmp.eq.s32.totalorder %s22, 0
        // Predicated region
        $region29: #{tpu_custom_call.1} parent=23 // pred_check
          %p179 = pneg %p178
        $region30: #{tpu_custom_call.1} parent=23 // pred_check_branch
          %181 = sbr.rel (%p179) target = $region32
        $region31: #{tpu_custom_call.1} parent=23 // pred_region
          %182 = vst [vmem:[#allocation2] sm:$0xff] 0.0
          %183 = vst [vmem:[#allocation2 + $0x8] sm:$0xff] 0.0
          %184 = vst [vmem:[#allocation2 + $0x10] sm:$0xff] 0.0
          %185 = vst [vmem:[#allocation2 + $0x18] sm:$0xff] 0.0
          %186 = vst [vmem:[#allocation2 + $0x20] sm:$0xff] 0.0
          %187 = vst [vmem:[#allocation2 + $0x28] sm:$0xff] 0.0
          %188 = vst [vmem:[#allocation2 + $0x30] sm:$0xff] 0.0
          %189 = vst [vmem:[#allocation2 + $0x38] sm:$0xff] 0.0
          %190 = vst [vmem:[#allocation2 + $0x40] sm:$0xff] 0.0
          %191 = vst [vmem:[#allocation2 + $0x48] sm:$0xff] 0.0
          %192 = vst [vmem:[#allocation2 + $0x50] sm:$0xff] 0.0
          %193 = vst [vmem:[#allocation2 + $0x58] sm:$0xff] 0.0
          %194 = vst [vmem:[#allocation2 + $0x60] sm:$0xff] 0.0
          %195 = vst [vmem:[#allocation2 + $0x68] sm:$0xff] 0.0
          %196 = vst [vmem:[#allocation2 + $0x70] sm:$0xff] 0.0
          %197 = vst [vmem:[#allocation2 + $0x78] sm:$0xff] 0.0
          %198 = vst [vmem:[#allocation2 + $0x80] sm:$0xff] 0.0
          %199 = vst [vmem:[#allocation2 + $0x88] sm:$0xff] 0.0
          %200 = vst [vmem:[#allocation2 + $0x90] sm:$0xff] 0.0
          %201 = vst [vmem:[#allocation2 + $0x98] sm:$0xff] 0.0
          %202 = vst [vmem:[#allocation2 + $0xa0] sm:$0xff] 0.0
          %203 = vst [vmem:[#allocation2 + $0xa8] sm:$0xff] 0.0
          %204 = vst [vmem:[#allocation2 + $0xb0] sm:$0xff] 0.0
          %205 = vst [vmem:[#allocation2 + $0xb8] sm:$0xff] 0.0
          %206 = vst [vmem:[#allocation2 + $0xc0] sm:$0xff] 0.0
          %207 = vst [vmem:[#allocation2 + $0xc8] sm:$0xff] 0.0
          %208 = vst [vmem:[#allocation2 + $0xd0] sm:$0xff] 0.0
          %209 = vst [vmem:[#allocation2 + $0xd8] sm:$0xff] 0.0
          %210 = vst [vmem:[#allocation2 + $0xe0] sm:$0xff] 0.0
          %211 = vst [vmem:[#allocation2 + $0xe8] sm:$0xff] 0.0
          %212 = vst [vmem:[#allocation2 + $0xf0] sm:$0xff] 0.0
          %213 = vst [vmem:[#allocation2 + $0xf8] sm:$0xff] 0.0
          %214 = vst [vmem:[#allocation2 + $0x100] sm:$0xff] 0.0
          %215 = vst [vmem:[#allocation2 + $0x108] sm:$0xff] 0.0
          %216 = vst [vmem:[#allocation2 + $0x110] sm:$0xff] 0.0
          %217 = vst [vmem:[#allocation2 + $0x118] sm:$0xff] 0.0
          %218 = vst [vmem:[#allocation2 + $0x120] sm:$0xff] 0.0
          %219 = vst [vmem:[#allocation2 + $0x128] sm:$0xff] 0.0
          %220 = vst [vmem:[#allocation2 + $0x130] sm:$0xff] 0.0
          %221 = vst [vmem:[#allocation2 + $0x138] sm:$0xff] 0.0
          %222 = vst [vmem:[#allocation2 + $0x140] sm:$0xff] 0.0
          %223 = vst [vmem:[#allocation2 + $0x148] sm:$0xff] 0.0
          %224 = vst [vmem:[#allocation2 + $0x150] sm:$0xff] 0.0
          %225 = vst [vmem:[#allocation2 + $0x158] sm:$0xff] 0.0
          %226 = vst [vmem:[#allocation2 + $0x160] sm:$0xff] 0.0
          %227 = vst [vmem:[#allocation2 + $0x168] sm:$0xff] 0.0
          %228 = vst [vmem:[#allocation2 + $0x170] sm:$0xff] 0.0
          %229 = vst [vmem:[#allocation2 + $0x178] sm:$0xff] 0.0
          %230 = vst [vmem:[#allocation2 + $0x180] sm:$0xff] 0.0
          %231 = vst [vmem:[#allocation2 + $0x188] sm:$0xff] 0.0
          %232 = vst [vmem:[#allocation2 + $0x190] sm:$0xff] 0.0
          %233 = vst [vmem:[#allocation2 + $0x198] sm:$0xff] 0.0
          %234 = vst [vmem:[#allocation2 + $0x1a0] sm:$0xff] 0.0
          %235 = vst [vmem:[#allocation2 + $0x1a8] sm:$0xff] 0.0
          %236 = vst [vmem:[#allocation2 + $0x1b0] sm:$0xff] 0.0
          %237 = vst [vmem:[#allocation2 + $0x1b8] sm:$0xff] 0.0
          %238 = vst [vmem:[#allocation2 + $0x1c0] sm:$0xff] 0.0
          %239 = vst [vmem:[#allocation2 + $0x1c8] sm:$0xff] 0.0
          %240 = vst [vmem:[#allocation2 + $0x1d0] sm:$0xff] 0.0
          %241 = vst [vmem:[#allocation2 + $0x1d8] sm:$0xff] 0.0
          %242 = vst [vmem:[#allocation2 + $0x1e0] sm:$0xff] 0.0
          %243 = vst [vmem:[#allocation2 + $0x1e8] sm:$0xff] 0.0
          %244 = vst [vmem:[#allocation2 + $0x1f0] sm:$0xff] 0.0
          %245 = vst [vmem:[#allocation2 + $0x1f8] sm:$0xff] 0.0
          %246 = vst [vmem:[#allocation2 + $0x200] sm:$0xff] 0.0
          %247 = vst [vmem:[#allocation2 + $0x208] sm:$0xff] 0.0
          %248 = vst [vmem:[#allocation2 + $0x210] sm:$0xff] 0.0
          %249 = vst [vmem:[#allocation2 + $0x218] sm:$0xff] 0.0
          %250 = vst [vmem:[#allocation2 + $0x220] sm:$0xff] 0.0
          %251 = vst [vmem:[#allocation2 + $0x228] sm:$0xff] 0.0
          %252 = vst [vmem:[#allocation2 + $0x230] sm:$0xff] 0.0
          %253 = vst [vmem:[#allocation2 + $0x238] sm:$0xff] 0.0
          %254 = vst [vmem:[#allocation2 + $0x240] sm:$0xff] 0.0
          %255 = vst [vmem:[#allocation2 + $0x248] sm:$0xff] 0.0
          %256 = vst [vmem:[#allocation2 + $0x250] sm:$0xff] 0.0
          %257 = vst [vmem:[#allocation2 + $0x258] sm:$0xff] 0.0
          %258 = vst [vmem:[#allocation2 + $0x260] sm:$0xff] 0.0
          %259 = vst [vmem:[#allocation2 + $0x268] sm:$0xff] 0.0
          %260 = vst [vmem:[#allocation2 + $0x270] sm:$0xff] 0.0
          %261 = vst [vmem:[#allocation2 + $0x278] sm:$0xff] 0.0
          %262 = vst [vmem:[#allocation2 + $0x280] sm:$0xff] 0.0
          %263 = vst [vmem:[#allocation2 + $0x288] sm:$0xff] 0.0
          %264 = vst [vmem:[#allocation2 + $0x290] sm:$0xff] 0.0
          %265 = vst [vmem:[#allocation2 + $0x298] sm:$0xff] 0.0
          %266 = vst [vmem:[#allocation2 + $0x2a0] sm:$0xff] 0.0
          %267 = vst [vmem:[#allocation2 + $0x2a8] sm:$0xff] 0.0
          %268 = vst [vmem:[#allocation2 + $0x2b0] sm:$0xff] 0.0
          %269 = vst [vmem:[#allocation2 + $0x2b8] sm:$0xff] 0.0
          %270 = vst [vmem:[#allocation2 + $0x2c0] sm:$0xff] 0.0
          %271 = vst [vmem:[#allocation2 + $0x2c8] sm:$0xff] 0.0
          %272 = vst [vmem:[#allocation2 + $0x2d0] sm:$0xff] 0.0
          %273 = vst [vmem:[#allocation2 + $0x2d8] sm:$0xff] 0.0
          %274 = vst [vmem:[#allocation2 + $0x2e0] sm:$0xff] 0.0
          %275 = vst [vmem:[#allocation2 + $0x2e8] sm:$0xff] 0.0
          %276 = vst [vmem:[#allocation2 + $0x2f0] sm:$0xff] 0.0
          %277 = vst [vmem:[#allocation2 + $0x2f8] sm:$0xff] 0.0
          %278 = vst [vmem:[#allocation2 + $0x300] sm:$0xff] 0.0
          %279 = vst [vmem:[#allocation2 + $0x308] sm:$0xff] 0.0
          %280 = vst [vmem:[#allocation2 + $0x310] sm:$0xff] 0.0
          %281 = vst [vmem:[#allocation2 + $0x318] sm:$0xff] 0.0
          %282 = vst [vmem:[#allocation2 + $0x320] sm:$0xff] 0.0
          %283 = vst [vmem:[#allocation2 + $0x328] sm:$0xff] 0.0
          %284 = vst [vmem:[#allocation2 + $0x330] sm:$0xff] 0.0
          %285 = vst [vmem:[#allocation2 + $0x338] sm:$0xff] 0.0
          %286 = vst [vmem:[#allocation2 + $0x340] sm:$0xff] 0.0
          %287 = vst [vmem:[#allocation2 + $0x348] sm:$0xff] 0.0
          %288 = vst [vmem:[#allocation2 + $0x350] sm:$0xff] 0.0
          %289 = vst [vmem:[#allocation2 + $0x358] sm:$0xff] 0.0
          %290 = vst [vmem:[#allocation2 + $0x360] sm:$0xff] 0.0
          %291 = vst [vmem:[#allocation2 + $0x368] sm:$0xff] 0.0
          %292 = vst [vmem:[#allocation2 + $0x370] sm:$0xff] 0.0
          %293 = vst [vmem:[#allocation2 + $0x378] sm:$0xff] 0.0
          %294 = vst [vmem:[#allocation2 + $0x380] sm:$0xff] 0.0
          %295 = vst [vmem:[#allocation2 + $0x388] sm:$0xff] 0.0
          %296 = vst [vmem:[#allocation2 + $0x390] sm:$0xff] 0.0
          %297 = vst [vmem:[#allocation2 + $0x398] sm:$0xff] 0.0
          %298 = vst [vmem:[#allocation2 + $0x3a0] sm:$0xff] 0.0
          %299 = vst [vmem:[#allocation2 + $0x3a8] sm:$0xff] 0.0
          %300 = vst [vmem:[#allocation2 + $0x3b0] sm:$0xff] 0.0
          %301 = vst [vmem:[#allocation2 + $0x3b8] sm:$0xff] 0.0
          %302 = vst [vmem:[#allocation2 + $0x3c0] sm:$0xff] 0.0
          %303 = vst [vmem:[#allocation2 + $0x3c8] sm:$0xff] 0.0
          %304 = vst [vmem:[#allocation2 + $0x3d0] sm:$0xff] 0.0
          %305 = vst [vmem:[#allocation2 + $0x3d8] sm:$0xff] 0.0
          %306 = vst [vmem:[#allocation2 + $0x3e0] sm:$0xff] 0.0
          %307 = vst [vmem:[#allocation2 + $0x3e8] sm:$0xff] 0.0
          %308 = vst [vmem:[#allocation2 + $0x3f0] sm:$0xff] 0.0
          %309 = vst [vmem:[#allocation2 + $0x3f8] sm:$0xff] 0.0
        $region32: #{tpu_custom_call.1} parent=23 // pred_fallthru
          _
        %v310 = vld [vmem:[%s143] sm:$0xff]
        %v311 = vld [vmem:[%s143 + $0x8] sm:$0xff]
        %v312 = vld [vmem:[%s143 + $0x10] sm:$0xff]
        %v313 = vld [vmem:[%s143 + $0x18] sm:$0xff]
        %v314 = vld [vmem:[%s143 + $0x20] sm:$0xff]
        %v315 = vld [vmem:[%s143 + $0x28] sm:$0xff]
        %v316 = vld [vmem:[%s143 + $0x30] sm:$0xff]
        %v317 = vld [vmem:[%s143 + $0x38] sm:$0xff]
        %v318 = vld [vmem:[%s143 + $0x40] sm:$0xff]
        %v319 = vld [vmem:[%s143 + $0x48] sm:$0xff]
        %v320 = vld [vmem:[%s143 + $0x50] sm:$0xff]
        %v321 = vld [vmem:[%s143 + $0x58] sm:$0xff]
        %v322 = vld [vmem:[%s143 + $0x60] sm:$0xff]
        %v323 = vld [vmem:[%s143 + $0x68] sm:$0xff]
        %v324 = vld [vmem:[%s143 + $0x70] sm:$0xff]
        %v325 = vld [vmem:[%s143 + $0x78] sm:$0xff]
        %v326 = vld [vmem:[%s143 + $0x80] sm:$0xff]
        %v327 = vld [vmem:[%s143 + $0x88] sm:$0xff]
        %v328 = vld [vmem:[%s143 + $0x90] sm:$0xff]
        %v329 = vld [vmem:[%s143 + $0x98] sm:$0xff]
        %v330 = vld [vmem:[%s143 + $0xa0] sm:$0xff]
        %v331 = vld [vmem:[%s143 + $0xa8] sm:$0xff]
        %v332 = vld [vmem:[%s143 + $0xb0] sm:$0xff]
        %v333 = vld [vmem:[%s143 + $0xb8] sm:$0xff]
        %v334 = vld [vmem:[%s143 + $0xc0] sm:$0xff]
        %v335 = vld [vmem:[%s143 + $0xc8] sm:$0xff]
        %v336 = vld [vmem:[%s143 + $0xd0] sm:$0xff]
        %v337 = vld [vmem:[%s143 + $0xd8] sm:$0xff]
        %v338 = vld [vmem:[%s143 + $0xe0] sm:$0xff]
        %v339 = vld [vmem:[%s143 + $0xe8] sm:$0xff]
        %v340 = vld [vmem:[%s143 + $0xf0] sm:$0xff]
        %v341 = vld [vmem:[%s143 + $0xf8] sm:$0xff]
        %v342 = vld [vmem:[%s143 + $0x100] sm:$0xff]
        %v343 = vld [vmem:[%s143 + $0x108] sm:$0xff]
        %v344 = vld [vmem:[%s143 + $0x110] sm:$0xff]
        %v345 = vld [vmem:[%s143 + $0x118] sm:$0xff]
        %v346 = vld [vmem:[%s143 + $0x120] sm:$0xff]
        %v347 = vld [vmem:[%s143 + $0x128] sm:$0xff]
        %v348 = vld [vmem:[%s143 + $0x130] sm:$0xff]
        %v349 = vld [vmem:[%s143 + $0x138] sm:$0xff]
        %v350 = vld [vmem:[%s143 + $0x140] sm:$0xff]
        %v351 = vld [vmem:[%s143 + $0x148] sm:$0xff]
        %v352 = vld [vmem:[%s143 + $0x150] sm:$0xff]
        %v353 = vld [vmem:[%s143 + $0x158] sm:$0xff]
        %v354 = vld [vmem:[%s143 + $0x160] sm:$0xff]
        %v355 = vld [vmem:[%s143 + $0x168] sm:$0xff]
        %v356 = vld [vmem:[%s143 + $0x170] sm:$0xff]
        %v357 = vld [vmem:[%s143 + $0x178] sm:$0xff]
        %v358 = vld [vmem:[%s143 + $0x180] sm:$0xff]
        %v359 = vld [vmem:[%s143 + $0x188] sm:$0xff]
        %v360 = vld [vmem:[%s143 + $0x190] sm:$0xff]
        %v361 = vld [vmem:[%s143 + $0x198] sm:$0xff]
        %v362 = vld [vmem:[%s143 + $0x1a0] sm:$0xff]
        %v363 = vld [vmem:[%s143 + $0x1a8] sm:$0xff]
        %v364 = vld [vmem:[%s143 + $0x1b0] sm:$0xff]
        %v365 = vld [vmem:[%s143 + $0x1b8] sm:$0xff]
        %v366 = vld [vmem:[%s143 + $0x1c0] sm:$0xff]
        %v367 = vld [vmem:[%s143 + $0x1c8] sm:$0xff]
        %v368 = vld [vmem:[%s143 + $0x1d0] sm:$0xff]
        %v369 = vld [vmem:[%s143 + $0x1d8] sm:$0xff]
        %v370 = vld [vmem:[%s143 + $0x1e0] sm:$0xff]
        %v371 = vld [vmem:[%s143 + $0x1e8] sm:$0xff]
        %v372 = vld [vmem:[%s143 + $0x1f0] sm:$0xff]
        %v373 = vld [vmem:[%s143 + $0x1f8] sm:$0xff]
        %v374 = vld [vmem:[%s143 + $0x200] sm:$0xff]
        %v375 = vld [vmem:[%s143 + $0x208] sm:$0xff]
        %v376 = vld [vmem:[%s143 + $0x210] sm:$0xff]
        %v377 = vld [vmem:[%s143 + $0x218] sm:$0xff]
        %v378 = vld [vmem:[%s143 + $0x220] sm:$0xff]
        %v379 = vld [vmem:[%s143 + $0x228] sm:$0xff]
        %v380 = vld [vmem:[%s143 + $0x230] sm:$0xff]
        %v381 = vld [vmem:[%s143 + $0x238] sm:$0xff]
        %v382 = vld [vmem:[%s143 + $0x240] sm:$0xff]
        %v383 = vld [vmem:[%s143 + $0x248] sm:$0xff]
        %v384 = vld [vmem:[%s143 + $0x250] sm:$0xff]
        %v385 = vld [vmem:[%s143 + $0x258] sm:$0xff]
        %v386 = vld [vmem:[%s143 + $0x260] sm:$0xff]
        %v387 = vld [vmem:[%s143 + $0x268] sm:$0xff]
        %v388 = vld [vmem:[%s143 + $0x270] sm:$0xff]
        %v389 = vld [vmem:[%s143 + $0x278] sm:$0xff]
        %v390 = vld [vmem:[%s143 + $0x280] sm:$0xff]
        %v391 = vld [vmem:[%s143 + $0x288] sm:$0xff]
        %v392 = vld [vmem:[%s143 + $0x290] sm:$0xff]
        %v393 = vld [vmem:[%s143 + $0x298] sm:$0xff]
        %v394 = vld [vmem:[%s143 + $0x2a0] sm:$0xff]
        %v395 = vld [vmem:[%s143 + $0x2a8] sm:$0xff]
        %v396 = vld [vmem:[%s143 + $0x2b0] sm:$0xff]
        %v397 = vld [vmem:[%s143 + $0x2b8] sm:$0xff]
        %v398 = vld [vmem:[%s143 + $0x2c0] sm:$0xff]
        %v399 = vld [vmem:[%s143 + $0x2c8] sm:$0xff]
        %v400 = vld [vmem:[%s143 + $0x2d0] sm:$0xff]
        %v401 = vld [vmem:[%s143 + $0x2d8] sm:$0xff]
        %v402 = vld [vmem:[%s143 + $0x2e0] sm:$0xff]
        %v403 = vld [vmem:[%s143 + $0x2e8] sm:$0xff]
        %v404 = vld [vmem:[%s143 + $0x2f0] sm:$0xff]
        %v405 = vld [vmem:[%s143 + $0x2f8] sm:$0xff]
        %v406 = vld [vmem:[%s143 + $0x300] sm:$0xff]
        %v407 = vld [vmem:[%s143 + $0x308] sm:$0xff]
        %v408 = vld [vmem:[%s143 + $0x310] sm:$0xff]
        %v409 = vld [vmem:[%s143 + $0x318] sm:$0xff]
        %v410 = vld [vmem:[%s143 + $0x320] sm:$0xff]
        %v411 = vld [vmem:[%s143 + $0x328] sm:$0xff]
        %v412 = vld [vmem:[%s143 + $0x330] sm:$0xff]
        %v413 = vld [vmem:[%s143 + $0x338] sm:$0xff]
        %v414 = vld [vmem:[%s143 + $0x340] sm:$0xff]
        %v415 = vld [vmem:[%s143 + $0x348] sm:$0xff]
        %v416 = vld [vmem:[%s143 + $0x350] sm:$0xff]
        %v417 = vld [vmem:[%s143 + $0x358] sm:$0xff]
        %v418 = vld [vmem:[%s143 + $0x360] sm:$0xff]
        %v419 = vld [vmem:[%s143 + $0x368] sm:$0xff]
        %v420 = vld [vmem:[%s143 + $0x370] sm:$0xff]
        %v421 = vld [vmem:[%s143 + $0x378] sm:$0xff]
        %v422 = vld [vmem:[%s143 + $0x380] sm:$0xff]
        %v423 = vld [vmem:[%s143 + $0x388] sm:$0xff]
        %v424 = vld [vmem:[%s143 + $0x390] sm:$0xff]
        %v425 = vld [vmem:[%s143 + $0x398] sm:$0xff]
        %v426 = vld [vmem:[%s143 + $0x3a0] sm:$0xff]
        %v427 = vld [vmem:[%s143 + $0x3a8] sm:$0xff]
        %v428 = vld [vmem:[%s143 + $0x3b0] sm:$0xff]
        %v429 = vld [vmem:[%s143 + $0x3b8] sm:$0xff]
        %v430 = vld [vmem:[%s143 + $0x3c0] sm:$0xff]
        %v431 = vld [vmem:[%s143 + $0x3c8] sm:$0xff]
        %v432 = vld [vmem:[%s143 + $0x3d0] sm:$0xff]
        %v433 = vld [vmem:[%s143 + $0x3d8] sm:$0xff]
        %v434 = vld [vmem:[%s143 + $0x3e0] sm:$0xff]
        %v435 = vld [vmem:[%s143 + $0x3e8] sm:$0xff]
        %v436 = vld [vmem:[%s143 + $0x3f0] sm:$0xff]
        %v437 = vld [vmem:[%s143 + $0x3f8] sm:$0xff]
        %v438 = vld [vmem:[%s143 + $0x400] sm:$0xff]
        %v439 = vld [vmem:[%s143 + $0x408] sm:$0xff]
        %v440 = vld [vmem:[%s143 + $0x410] sm:$0xff]
        %v441 = vld [vmem:[%s143 + $0x418] sm:$0xff]
        %v442 = vld [vmem:[%s143 + $0x420] sm:$0xff]
        %v443 = vld [vmem:[%s143 + $0x428] sm:$0xff]
        %v444 = vld [vmem:[%s143 + $0x430] sm:$0xff]
        %v445 = vld [vmem:[%s143 + $0x438] sm:$0xff]
        %v446 = vld [vmem:[%s143 + $0x440] sm:$0xff]
        %v447 = vld [vmem:[%s143 + $0x448] sm:$0xff]
        %v448 = vld [vmem:[%s143 + $0x450] sm:$0xff]
        %v449 = vld [vmem:[%s143 + $0x458] sm:$0xff]
        %v450 = vld [vmem:[%s143 + $0x460] sm:$0xff]
        %v451 = vld [vmem:[%s143 + $0x468] sm:$0xff]
        %v452 = vld [vmem:[%s143 + $0x470] sm:$0xff]
        %v453 = vld [vmem:[%s143 + $0x478] sm:$0xff]
        %v454 = vld [vmem:[%s143 + $0x480] sm:$0xff]
        %v455 = vld [vmem:[%s143 + $0x488] sm:$0xff]
        %v456 = vld [vmem:[%s143 + $0x490] sm:$0xff]
        %v457 = vld [vmem:[%s143 + $0x498] sm:$0xff]
        %v458 = vld [vmem:[%s143 + $0x4a0] sm:$0xff]
        %v459 = vld [vmem:[%s143 + $0x4a8] sm:$0xff]
        %v460 = vld [vmem:[%s143 + $0x4b0] sm:$0xff]
        %v461 = vld [vmem:[%s143 + $0x4b8] sm:$0xff]
        %v462 = vld [vmem:[%s143 + $0x4c0] sm:$0xff]
        %v463 = vld [vmem:[%s143 + $0x4c8] sm:$0xff]
        %v464 = vld [vmem:[%s143 + $0x4d0] sm:$0xff]
        %v465 = vld [vmem:[%s143 + $0x4d8] sm:$0xff]
        %v466 = vld [vmem:[%s143 + $0x4e0] sm:$0xff]
        %v467 = vld [vmem:[%s143 + $0x4e8] sm:$0xff]
        %v468 = vld [vmem:[%s143 + $0x4f0] sm:$0xff]
        %v469 = vld [vmem:[%s143 + $0x4f8] sm:$0xff]
        %v470 = vld [vmem:[%s143 + $0x500] sm:$0xff]
        %v471 = vld [vmem:[%s143 + $0x508] sm:$0xff]
        %v472 = vld [vmem:[%s143 + $0x510] sm:$0xff]
        %v473 = vld [vmem:[%s143 + $0x518] sm:$0xff]
        %v474 = vld [vmem:[%s143 + $0x520] sm:$0xff]
        %v475 = vld [vmem:[%s143 + $0x528] sm:$0xff]
        %v476 = vld [vmem:[%s143 + $0x530] sm:$0xff]
        %v477 = vld [vmem:[%s143 + $0x538] sm:$0xff]
        %v478 = vld [vmem:[%s143 + $0x540] sm:$0xff]
        %v479 = vld [vmem:[%s143 + $0x548] sm:$0xff]
        %v480 = vld [vmem:[%s143 + $0x550] sm:$0xff]
        %v481 = vld [vmem:[%s143 + $0x558] sm:$0xff]
        %v482 = vld [vmem:[%s143 + $0x560] sm:$0xff]
        %v483 = vld [vmem:[%s143 + $0x568] sm:$0xff]
        %v484 = vld [vmem:[%s143 + $0x570] sm:$0xff]
        %v485 = vld [vmem:[%s143 + $0x578] sm:$0xff]
        %v486 = vld [vmem:[%s143 + $0x580] sm:$0xff]
        %v487 = vld [vmem:[%s143 + $0x588] sm:$0xff]
        %v488 = vld [vmem:[%s143 + $0x590] sm:$0xff]
        %v489 = vld [vmem:[%s143 + $0x598] sm:$0xff]
        %v490 = vld [vmem:[%s143 + $0x5a0] sm:$0xff]
        %v491 = vld [vmem:[%s143 + $0x5a8] sm:$0xff]
        %v492 = vld [vmem:[%s143 + $0x5b0] sm:$0xff]
        %v493 = vld [vmem:[%s143 + $0x5b8] sm:$0xff]
        %v494 = vld [vmem:[%s143 + $0x5c0] sm:$0xff]
        %v495 = vld [vmem:[%s143 + $0x5c8] sm:$0xff]
        %v496 = vld [vmem:[%s143 + $0x5d0] sm:$0xff]
        %v497 = vld [vmem:[%s143 + $0x5d8] sm:$0xff]
        %v498 = vld [vmem:[%s143 + $0x5e0] sm:$0xff]
        %v499 = vld [vmem:[%s143 + $0x5e8] sm:$0xff]
        %v500 = vld [vmem:[%s143 + $0x5f0] sm:$0xff]
        %v501 = vld [vmem:[%s143 + $0x5f8] sm:$0xff]
        %v502 = vld [vmem:[%s143 + $0x600] sm:$0xff]
        %v503 = vld [vmem:[%s143 + $0x608] sm:$0xff]
        %v504 = vld [vmem:[%s143 + $0x610] sm:$0xff]
        %v505 = vld [vmem:[%s143 + $0x618] sm:$0xff]
        %v506 = vld [vmem:[%s143 + $0x620] sm:$0xff]
        %v507 = vld [vmem:[%s143 + $0x628] sm:$0xff]
        %v508 = vld [vmem:[%s143 + $0x630] sm:$0xff]
        %v509 = vld [vmem:[%s143 + $0x638] sm:$0xff]
        %v510 = vld [vmem:[%s143 + $0x640] sm:$0xff]
        %v511 = vld [vmem:[%s143 + $0x648] sm:$0xff]
        %v512 = vld [vmem:[%s143 + $0x650] sm:$0xff]
        %v513 = vld [vmem:[%s143 + $0x658] sm:$0xff]
        %v514 = vld [vmem:[%s143 + $0x660] sm:$0xff]
        %v515 = vld [vmem:[%s143 + $0x668] sm:$0xff]
        %v516 = vld [vmem:[%s143 + $0x670] sm:$0xff]
        %v517 = vld [vmem:[%s143 + $0x678] sm:$0xff]
        %v518 = vld [vmem:[%s143 + $0x680] sm:$0xff]
        %v519 = vld [vmem:[%s143 + $0x688] sm:$0xff]
        %v520 = vld [vmem:[%s143 + $0x690] sm:$0xff]
        %v521 = vld [vmem:[%s143 + $0x698] sm:$0xff]
        %v522 = vld [vmem:[%s143 + $0x6a0] sm:$0xff]
        %v523 = vld [vmem:[%s143 + $0x6a8] sm:$0xff]
        %v524 = vld [vmem:[%s143 + $0x6b0] sm:$0xff]
        %v525 = vld [vmem:[%s143 + $0x6b8] sm:$0xff]
        %v526 = vld [vmem:[%s143 + $0x6c0] sm:$0xff]
        %v527 = vld [vmem:[%s143 + $0x6c8] sm:$0xff]
        %v528 = vld [vmem:[%s143 + $0x6d0] sm:$0xff]
        %v529 = vld [vmem:[%s143 + $0x6d8] sm:$0xff]
        %v530 = vld [vmem:[%s143 + $0x6e0] sm:$0xff]
        %v531 = vld [vmem:[%s143 + $0x6e8] sm:$0xff]
        %v532 = vld [vmem:[%s143 + $0x6f0] sm:$0xff]
        %v533 = vld [vmem:[%s143 + $0x6f8] sm:$0xff]
        %v534 = vld [vmem:[%s143 + $0x700] sm:$0xff]
        %v535 = vld [vmem:[%s143 + $0x708] sm:$0xff]
        %v536 = vld [vmem:[%s143 + $0x710] sm:$0xff]
        %v537 = vld [vmem:[%s143 + $0x718] sm:$0xff]
        %v538 = vld [vmem:[%s143 + $0x720] sm:$0xff]
        %v539 = vld [vmem:[%s143 + $0x728] sm:$0xff]
        %v540 = vld [vmem:[%s143 + $0x730] sm:$0xff]
        %v541 = vld [vmem:[%s143 + $0x738] sm:$0xff]
        %v542 = vld [vmem:[%s143 + $0x740] sm:$0xff]
        %v543 = vld [vmem:[%s143 + $0x748] sm:$0xff]
        %v544 = vld [vmem:[%s143 + $0x750] sm:$0xff]
        %v545 = vld [vmem:[%s143 + $0x758] sm:$0xff]
        %v546 = vld [vmem:[%s143 + $0x760] sm:$0xff]
        %v547 = vld [vmem:[%s143 + $0x768] sm:$0xff]
        %v548 = vld [vmem:[%s143 + $0x770] sm:$0xff]
        %v549 = vld [vmem:[%s143 + $0x778] sm:$0xff]
        %v550 = vld [vmem:[%s143 + $0x780] sm:$0xff]
        %v551 = vld [vmem:[%s143 + $0x788] sm:$0xff]
        %v552 = vld [vmem:[%s143 + $0x790] sm:$0xff]
        %v553 = vld [vmem:[%s143 + $0x798] sm:$0xff]
        %v554 = vld [vmem:[%s143 + $0x7a0] sm:$0xff]
        %v555 = vld [vmem:[%s143 + $0x7a8] sm:$0xff]
        %v556 = vld [vmem:[%s143 + $0x7b0] sm:$0xff]
        %v557 = vld [vmem:[%s143 + $0x7b8] sm:$0xff]
        %v558 = vld [vmem:[%s143 + $0x7c0] sm:$0xff]
        %v559 = vld [vmem:[%s143 + $0x7c8] sm:$0xff]
        %v560 = vld [vmem:[%s143 + $0x7d0] sm:$0xff]
        %v561 = vld [vmem:[%s143 + $0x7d8] sm:$0xff]
        %v562 = vld [vmem:[%s143 + $0x7e0] sm:$0xff]
        %v563 = vld [vmem:[%s143 + $0x7e8] sm:$0xff]
        %v564 = vld [vmem:[%s143 + $0x7f0] sm:$0xff]
        %v565 = vld [vmem:[%s143 + $0x7f8] sm:$0xff]
        %v566 = vadd.f32 %v310, %v311
        %v567 = vadd.f32 %v312, %v313
        %v568 = vadd.f32 %v314, %v315
        %v569 = vadd.f32 %v316, %v317
        %v570 = vadd.f32 %v318, %v319
        %v571 = vadd.f32 %v320, %v321
        %v572 = vadd.f32 %v322, %v323
        %v573 = vadd.f32 %v324, %v325
        %v574 = vadd.f32 %v326, %v327
        %v575 = vadd.f32 %v328, %v329
        %v576 = vadd.f32 %v330, %v331
        %v577 = vadd.f32 %v332, %v333
        %v578 = vadd.f32 %v334, %v335
        %v579 = vadd.f32 %v336, %v337
        %v580 = vadd.f32 %v338, %v339
        %v581 = vadd.f32 %v340, %v341
        %v582 = vadd.f32 %v342, %v343
        %v583 = vadd.f32 %v344, %v345
        %v584 = vadd.f32 %v346, %v347
        %v585 = vadd.f32 %v348, %v349
        %v586 = vadd.f32 %v350, %v351
        %v587 = vadd.f32 %v352, %v353
        %v588 = vadd.f32 %v354, %v355
        %v589 = vadd.f32 %v356, %v357
        %v590 = vadd.f32 %v358, %v359
        %v591 = vadd.f32 %v360, %v361
        %v592 = vadd.f32 %v362, %v363
        %v593 = vadd.f32 %v364, %v365
        %v594 = vadd.f32 %v366, %v367
        %v595 = vadd.f32 %v368, %v369
        %v596 = vadd.f32 %v370, %v371
        %v597 = vadd.f32 %v372, %v373
        %v598 = vadd.f32 %v374, %v375
        %v599 = vadd.f32 %v376, %v377
        %v600 = vadd.f32 %v378, %v379
        %v601 = vadd.f32 %v380, %v381
        %v602 = vadd.f32 %v382, %v383
        %v603 = vadd.f32 %v384, %v385
        %v604 = vadd.f32 %v386, %v387
        %v605 = vadd.f32 %v388, %v389
        %v606 = vadd.f32 %v390, %v391
        %v607 = vadd.f32 %v392, %v393
        %v608 = vadd.f32 %v394, %v395
        %v609 = vadd.f32 %v396, %v397
        %v610 = vadd.f32 %v398, %v399
        %v611 = vadd.f32 %v400, %v401
        %v612 = vadd.f32 %v402, %v403
        %v613 = vadd.f32 %v404, %v405
        %v614 = vadd.f32 %v406, %v407
        %v615 = vadd.f32 %v408, %v409
        %v616 = vadd.f32 %v410, %v411
        %v617 = vadd.f32 %v412, %v413
        %v618 = vadd.f32 %v414, %v415
        %v619 = vadd.f32 %v416, %v417
        %v620 = vadd.f32 %v418, %v419
        %v621 = vadd.f32 %v420, %v421
        %v622 = vadd.f32 %v422, %v423
        %v623 = vadd.f32 %v424, %v425
        %v624 = vadd.f32 %v426, %v427
        %v625 = vadd.f32 %v428, %v429
        %v626 = vadd.f32 %v430, %v431
        %v627 = vadd.f32 %v432, %v433
        %v628 = vadd.f32 %v434, %v435
        %v629 = vadd.f32 %v436, %v437
        %v630 = vadd.f32 %v438, %v439
        %v631 = vadd.f32 %v440, %v441
        %v632 = vadd.f32 %v442, %v443
        %v633 = vadd.f32 %v444, %v445
        %v634 = vadd.f32 %v446, %v447
        %v635 = vadd.f32 %v448, %v449
        %v636 = vadd.f32 %v450, %v451
        %v637 = vadd.f32 %v452, %v453
        %v638 = vadd.f32 %v454, %v455
        %v639 = vadd.f32 %v456, %v457
        %v640 = vadd.f32 %v458, %v459
        %v641 = vadd.f32 %v460, %v461
        %v642 = vadd.f32 %v462, %v463
        %v643 = vadd.f32 %v464, %v465
        %v644 = vadd.f32 %v466, %v467
        %v645 = vadd.f32 %v468, %v469
        %v646 = vadd.f32 %v470, %v471
        %v647 = vadd.f32 %v472, %v473
        %v648 = vadd.f32 %v474, %v475
        %v649 = vadd.f32 %v476, %v477
        %v650 = vadd.f32 %v478, %v479
        %v651 = vadd.f32 %v480, %v481
        %v652 = vadd.f32 %v482, %v483
        %v653 = vadd.f32 %v484, %v485
        %v654 = vadd.f32 %v486, %v487
        %v655 = vadd.f32 %v488, %v489
        %v656 = vadd.f32 %v490, %v491
        %v657 = vadd.f32 %v492, %v493
        %v658 = vadd.f32 %v494, %v495
        %v659 = vadd.f32 %v496, %v497
        %v660 = vadd.f32 %v498, %v499
        %v661 = vadd.f32 %v500, %v501
        %v662 = vadd.f32 %v502, %v503
        %v663 = vadd.f32 %v504, %v505
        %v664 = vadd.f32 %v506, %v507
        %v665 = vadd.f32 %v508, %v509
        %v666 = vadd.f32 %v510, %v511
        %v667 = vadd.f32 %v512, %v513
        %v668 = vadd.f32 %v514, %v515
        %v669 = vadd.f32 %v516, %v517
        %v670 = vadd.f32 %v518, %v519
        %v671 = vadd.f32 %v520, %v521
        %v672 = vadd.f32 %v522, %v523
        %v673 = vadd.f32 %v524, %v525
        %v674 = vadd.f32 %v526, %v527
        %v675 = vadd.f32 %v528, %v529
        %v676 = vadd.f32 %v530, %v531
        %v677 = vadd.f32 %v532, %v533
        %v678 = vadd.f32 %v534, %v535
        %v679 = vadd.f32 %v536, %v537
        %v680 = vadd.f32 %v538, %v539
        %v681 = vadd.f32 %v540, %v541
        %v682 = vadd.f32 %v542, %v543
        %v683 = vadd.f32 %v544, %v545
        %v684 = vadd.f32 %v546, %v547
        %v685 = vadd.f32 %v548, %v549
        %v686 = vadd.f32 %v550, %v551
        %v687 = vadd.f32 %v552, %v553
        %v688 = vadd.f32 %v554, %v555
        %v689 = vadd.f32 %v556, %v557
        %v690 = vadd.f32 %v558, %v559
        %v691 = vadd.f32 %v560, %v561
        %v692 = vadd.f32 %v562, %v563
        %v693 = vadd.f32 %v564, %v565
        %v694 = vld [vmem:[#allocation2] sm:$0xff]
        %v695 = vld [vmem:[#allocation2 + $0x8] sm:$0xff]
        %v696 = vld [vmem:[#allocation2 + $0x10] sm:$0xff]
        %v697 = vld [vmem:[#allocation2 + $0x18] sm:$0xff]
        %v698 = vld [vmem:[#allocation2 + $0x20] sm:$0xff]
        %v699 = vld [vmem:[#allocation2 + $0x28] sm:$0xff]
        %v700 = vld [vmem:[#allocation2 + $0x30] sm:$0xff]
        %v701 = vld [vmem:[#allocation2 + $0x38] sm:$0xff]
        %v702 = vld [vmem:[#allocation2 + $0x40] sm:$0xff]
        %v703 = vld [vmem:[#allocation2 + $0x48] sm:$0xff]
        %v704 = vld [vmem:[#allocation2 + $0x50] sm:$0xff]
        %v705 = vld [vmem:[#allocation2 + $0x58] sm:$0xff]
        %v706 = vld [vmem:[#allocation2 + $0x60] sm:$0xff]
        %v707 = vld [vmem:[#allocation2 + $0x68] sm:$0xff]
        %v708 = vld [vmem:[#allocation2 + $0x70] sm:$0xff]
        %v709 = vld [vmem:[#allocation2 + $0x78] sm:$0xff]
        %v710 = vld [vmem:[#allocation2 + $0x80] sm:$0xff]
        %v711 = vld [vmem:[#allocation2 + $0x88] sm:$0xff]
        %v712 = vld [vmem:[#allocation2 + $0x90] sm:$0xff]
        %v713 = vld [vmem:[#allocation2 + $0x98] sm:$0xff]
        %v714 = vld [vmem:[#allocation2 + $0xa0] sm:$0xff]
        %v715 = vld [vmem:[#allocation2 + $0xa8] sm:$0xff]
        %v716 = vld [vmem:[#allocation2 + $0xb0] sm:$0xff]
        %v717 = vld [vmem:[#allocation2 + $0xb8] sm:$0xff]
        %v718 = vld [vmem:[#allocation2 + $0xc0] sm:$0xff]
        %v719 = vld [vmem:[#allocation2 + $0xc8] sm:$0xff]
        %v720 = vld [vmem:[#allocation2 + $0xd0] sm:$0xff]
        %v721 = vld [vmem:[#allocation2 + $0xd8] sm:$0xff]
        %v722 = vld [vmem:[#allocation2 + $0xe0] sm:$0xff]
        %v723 = vld [vmem:[#allocation2 + $0xe8] sm:$0xff]
        %v724 = vld [vmem:[#allocation2 + $0xf0] sm:$0xff]
        %v725 = vld [vmem:[#allocation2 + $0xf8] sm:$0xff]
        %v726 = vld [vmem:[#allocation2 + $0x100] sm:$0xff]
        %v727 = vld [vmem:[#allocation2 + $0x108] sm:$0xff]
        %v728 = vld [vmem:[#allocation2 + $0x110] sm:$0xff]
        %v729 = vld [vmem:[#allocation2 + $0x118] sm:$0xff]
        %v730 = vld [vmem:[#allocation2 + $0x120] sm:$0xff]
        %v731 = vld [vmem:[#allocation2 + $0x128] sm:$0xff]
        %v732 = vld [vmem:[#allocation2 + $0x130] sm:$0xff]
        %v733 = vld [vmem:[#allocation2 + $0x138] sm:$0xff]
        %v734 = vld [vmem:[#allocation2 + $0x140] sm:$0xff]
        %v735 = vld [vmem:[#allocation2 + $0x148] sm:$0xff]
        %v736 = vld [vmem:[#allocation2 + $0x150] sm:$0xff]
        %v737 = vld [vmem:[#allocation2 + $0x158] sm:$0xff]
        %v738 = vld [vmem:[#allocation2 + $0x160] sm:$0xff]
        %v739 = vld [vmem:[#allocation2 + $0x168] sm:$0xff]
        %v740 = vld [vmem:[#allocation2 + $0x170] sm:$0xff]
        %v741 = vld [vmem:[#allocation2 + $0x178] sm:$0xff]
        %v742 = vld [vmem:[#allocation2 + $0x180] sm:$0xff]
        %v743 = vld [vmem:[#allocation2 + $0x188] sm:$0xff]
        %v744 = vld [vmem:[#allocation2 + $0x190] sm:$0xff]
        %v745 = vld [vmem:[#allocation2 + $0x198] sm:$0xff]
        %v746 = vld [vmem:[#allocation2 + $0x1a0] sm:$0xff]
        %v747 = vld [vmem:[#allocation2 + $0x1a8] sm:$0xff]
        %v748 = vld [vmem:[#allocation2 + $0x1b0] sm:$0xff]
        %v749 = vld [vmem:[#allocation2 + $0x1b8] sm:$0xff]
        %v750 = vld [vmem:[#allocation2 + $0x1c0] sm:$0xff]
        %v751 = vld [vmem:[#allocation2 + $0x1c8] sm:$0xff]
        %v752 = vld [vmem:[#allocation2 + $0x1d0] sm:$0xff]
        %v753 = vld [vmem:[#allocation2 + $0x1d8] sm:$0xff]
        %v754 = vld [vmem:[#allocation2 + $0x1e0] sm:$0xff]
        %v755 = vld [vmem:[#allocation2 + $0x1e8] sm:$0xff]
        %v756 = vld [vmem:[#allocation2 + $0x1f0] sm:$0xff]
        %v757 = vld [vmem:[#allocation2 + $0x1f8] sm:$0xff]
        %v758 = vld [vmem:[#allocation2 + $0x200] sm:$0xff]
        %v759 = vld [vmem:[#allocation2 + $0x208] sm:$0xff]
        %v760 = vld [vmem:[#allocation2 + $0x210] sm:$0xff]
        %v761 = vld [vmem:[#allocation2 + $0x218] sm:$0xff]
        %v762 = vld [vmem:[#allocation2 + $0x220] sm:$0xff]
        %v763 = vld [vmem:[#allocation2 + $0x228] sm:$0xff]
        %v764 = vld [vmem:[#allocation2 + $0x230] sm:$0xff]
        %v765 = vld [vmem:[#allocation2 + $0x238] sm:$0xff]
        %v766 = vld [vmem:[#allocation2 + $0x240] sm:$0xff]
        %v767 = vld [vmem:[#allocation2 + $0x248] sm:$0xff]
        %v768 = vld [vmem:[#allocation2 + $0x250] sm:$0xff]
        %v769 = vld [vmem:[#allocation2 + $0x258] sm:$0xff]
        %v770 = vld [vmem:[#allocation2 + $0x260] sm:$0xff]
        %v771 = vld [vmem:[#allocation2 + $0x268] sm:$0xff]
        %v772 = vld [vmem:[#allocation2 + $0x270] sm:$0xff]
        %v773 = vld [vmem:[#allocation2 + $0x278] sm:$0xff]
        %v774 = vld [vmem:[#allocation2 + $0x280] sm:$0xff]
        %v775 = vld [vmem:[#allocation2 + $0x288] sm:$0xff]
        %v776 = vld [vmem:[#allocation2 + $0x290] sm:$0xff]
        %v777 = vld [vmem:[#allocation2 + $0x298] sm:$0xff]
        %v778 = vld [vmem:[#allocation2 + $0x2a0] sm:$0xff]
        %v779 = vld [vmem:[#allocation2 + $0x2a8] sm:$0xff]
        %v780 = vld [vmem:[#allocation2 + $0x2b0] sm:$0xff]
        %v781 = vld [vmem:[#allocation2 + $0x2b8] sm:$0xff]
        %v782 = vld [vmem:[#allocation2 + $0x2c0] sm:$0xff]
        %v783 = vld [vmem:[#allocation2 + $0x2c8] sm:$0xff]
        %v784 = vld [vmem:[#allocation2 + $0x2d0] sm:$0xff]
        %v785 = vld [vmem:[#allocation2 + $0x2d8] sm:$0xff]
        %v786 = vld [vmem:[#allocation2 + $0x2e0] sm:$0xff]
        %v787 = vld [vmem:[#allocation2 + $0x2e8] sm:$0xff]
        %v788 = vld [vmem:[#allocation2 + $0x2f0] sm:$0xff]
        %v789 = vld [vmem:[#allocation2 + $0x2f8] sm:$0xff]
        %v790 = vld [vmem:[#allocation2 + $0x300] sm:$0xff]
        %v791 = vld [vmem:[#allocation2 + $0x308] sm:$0xff]
        %v792 = vld [vmem:[#allocation2 + $0x310] sm:$0xff]
        %v793 = vld [vmem:[#allocation2 + $0x318] sm:$0xff]
        %v794 = vld [vmem:[#allocation2 + $0x320] sm:$0xff]
        %v795 = vld [vmem:[#allocation2 + $0x328] sm:$0xff]
        %v796 = vld [vmem:[#allocation2 + $0x330] sm:$0xff]
        %v797 = vld [vmem:[#allocation2 + $0x338] sm:$0xff]
        %v798 = vld [vmem:[#allocation2 + $0x340] sm:$0xff]
        %v799 = vld [vmem:[#allocation2 + $0x348] sm:$0xff]
        %v800 = vld [vmem:[#allocation2 + $0x350] sm:$0xff]
        %v801 = vld [vmem:[#allocation2 + $0x358] sm:$0xff]
        %v802 = vld [vmem:[#allocation2 + $0x360] sm:$0xff]
        %v803 = vld [vmem:[#allocation2 + $0x368] sm:$0xff]
        %v804 = vld [vmem:[#allocation2 + $0x370] sm:$0xff]
        %v805 = vld [vmem:[#allocation2 + $0x378] sm:$0xff]
        %v806 = vld [vmem:[#allocation2 + $0x380] sm:$0xff]
        %v807 = vld [vmem:[#allocation2 + $0x388] sm:$0xff]
        %v808 = vld [vmem:[#allocation2 + $0x390] sm:$0xff]
        %v809 = vld [vmem:[#allocation2 + $0x398] sm:$0xff]
        %v810 = vld [vmem:[#allocation2 + $0x3a0] sm:$0xff]
        %v811 = vld [vmem:[#allocation2 + $0x3a8] sm:$0xff]
        %v812 = vld [vmem:[#allocation2 + $0x3b0] sm:$0xff]
        %v813 = vld [vmem:[#allocation2 + $0x3b8] sm:$0xff]
        %v814 = vld [vmem:[#allocation2 + $0x3c0] sm:$0xff]
        %v815 = vld [vmem:[#allocation2 + $0x3c8] sm:$0xff]
        %v816 = vld [vmem:[#allocation2 + $0x3d0] sm:$0xff]
        %v817 = vld [vmem:[#allocation2 + $0x3d8] sm:$0xff]
        %v818 = vld [vmem:[#allocation2 + $0x3e0] sm:$0xff]
        %v819 = vld [vmem:[#allocation2 + $0x3e8] sm:$0xff]
        %v820 = vld [vmem:[#allocation2 + $0x3f0] sm:$0xff]
        %v821 = vld [vmem:[#allocation2 + $0x3f8] sm:$0xff]
        %v822 = vadd.f32 %v694, %v566
        %v823 = vadd.f32 %v695, %v567
        %v824 = vadd.f32 %v696, %v568
        %v825 = vadd.f32 %v697, %v569
        %v826 = vadd.f32 %v698, %v570
        %v827 = vadd.f32 %v699, %v571
        %v828 = vadd.f32 %v700, %v572
        %v829 = vadd.f32 %v701, %v573
        %v830 = vadd.f32 %v702, %v574
        %v831 = vadd.f32 %v703, %v575
        %v832 = vadd.f32 %v704, %v576
        %v833 = vadd.f32 %v705, %v577
        %v834 = vadd.f32 %v706, %v578
        %v835 = vadd.f32 %v707, %v579
        %v836 = vadd.f32 %v708, %v580
        %v837 = vadd.f32 %v709, %v581
        %v838 = vadd.f32 %v710, %v582
        %v839 = vadd.f32 %v711, %v583
        %v840 = vadd.f32 %v712, %v584
        %v841 = vadd.f32 %v713, %v585
        %v842 = vadd.f32 %v714, %v586
        %v843 = vadd.f32 %v715, %v587
        %v844 = vadd.f32 %v716, %v588
        %v845 = vadd.f32 %v717, %v589
        %v846 = vadd.f32 %v718, %v590
        %v847 = vadd.f32 %v719, %v591
        %v848 = vadd.f32 %v720, %v592
        %v849 = vadd.f32 %v721, %v593
        %v850 = vadd.f32 %v722, %v594
        %v851 = vadd.f32 %v723, %v595
        %v852 = vadd.f32 %v724, %v596
        %v853 = vadd.f32 %v725, %v597
        %v854 = vadd.f32 %v726, %v598
        %v855 = vadd.f32 %v727, %v599
        %v856 = vadd.f32 %v728, %v600
        %v857 = vadd.f32 %v729, %v601
        %v858 = vadd.f32 %v730, %v602
        %v859 = vadd.f32 %v731, %v603
        %v860 = vadd.f32 %v732, %v604
        %v861 = vadd.f32 %v733, %v605
        %v862 = vadd.f32 %v734, %v606
        %v863 = vadd.f32 %v735, %v607
        %v864 = vadd.f32 %v736, %v608
        %v865 = vadd.f32 %v737, %v609
        %v866 = vadd.f32 %v738, %v610
        %v867 = vadd.f32 %v739, %v611
        %v868 = vadd.f32 %v740, %v612
        %v869 = vadd.f32 %v741, %v613
        %v870 = vadd.f32 %v742, %v614
        %v871 = vadd.f32 %v743, %v615
        %v872 = vadd.f32 %v744, %v616
        %v873 = vadd.f32 %v745, %v617
        %v874 = vadd.f32 %v746, %v618
        %v875 = vadd.f32 %v747, %v619
        %v876 = vadd.f32 %v748, %v620
        %v877 = vadd.f32 %v749, %v621
        %v878 = vadd.f32 %v750, %v622
        %v879 = vadd.f32 %v751, %v623
        %v880 = vadd.f32 %v752, %v624
        %v881 = vadd.f32 %v753, %v625
        %v882 = vadd.f32 %v754, %v626
        %v883 = vadd.f32 %v755, %v627
        %v884 = vadd.f32 %v756, %v628
        %v885 = vadd.f32 %v757, %v629
        %v886 = vadd.f32 %v758, %v630
        %v887 = vadd.f32 %v759, %v631
        %v888 = vadd.f32 %v760, %v632
        %v889 = vadd.f32 %v761, %v633
        %v890 = vadd.f32 %v762, %v634
        %v891 = vadd.f32 %v763, %v635
        %v892 = vadd.f32 %v764, %v636
        %v893 = vadd.f32 %v765, %v637
        %v894 = vadd.f32 %v766, %v638
        %v895 = vadd.f32 %v767, %v639
        %v896 = vadd.f32 %v768, %v640
        %v897 = vadd.f32 %v769, %v641
        %v898 = vadd.f32 %v770, %v642
        %v899 = vadd.f32 %v771, %v643
        %v900 = vadd.f32 %v772, %v644
        %v901 = vadd.f32 %v773, %v645
        %v902 = vadd.f32 %v774, %v646
        %v903 = vadd.f32 %v775, %v647
        %v904 = vadd.f32 %v776, %v648
        %v905 = vadd.f32 %v777, %v649
        %v906 = vadd.f32 %v778, %v650
        %v907 = vadd.f32 %v779, %v651
        %v908 = vadd.f32 %v780, %v652
        %v909 = vadd.f32 %v781, %v653
        %v910 = vadd.f32 %v782, %v654
        %v911 = vadd.f32 %v783, %v655
        %v912 = vadd.f32 %v784, %v656
        %v913 = vadd.f32 %v785, %v657
        %v914 = vadd.f32 %v786, %v658
        %v915 = vadd.f32 %v787, %v659
        %v916 = vadd.f32 %v788, %v660
        %v917 = vadd.f32 %v789, %v661
        %v918 = vadd.f32 %v790, %v662
        %v919 = vadd.f32 %v791, %v663
        %v920 = vadd.f32 %v792, %v664
        %v921 = vadd.f32 %v793, %v665
        %v922 = vadd.f32 %v794, %v666
        %v923 = vadd.f32 %v795, %v667
        %v924 = vadd.f32 %v796, %v668
        %v925 = vadd.f32 %v797, %v669
        %v926 = vadd.f32 %v798, %v670
        %v927 = vadd.f32 %v799, %v671
        %v928 = vadd.f32 %v800, %v672
        %v929 = vadd.f32 %v801, %v673
        %v930 = vadd.f32 %v802, %v674
        %v931 = vadd.f32 %v803, %v675
        %v932 = vadd.f32 %v804, %v676
        %v933 = vadd.f32 %v805, %v677
        %v934 = vadd.f32 %v806, %v678
        %v935 = vadd.f32 %v807, %v679
        %v936 = vadd.f32 %v808, %v680
        %v937 = vadd.f32 %v809, %v681
        %v938 = vadd.f32 %v810, %v682
        %v939 = vadd.f32 %v811, %v683
        %v940 = vadd.f32 %v812, %v684
        %v941 = vadd.f32 %v813, %v685
        %v942 = vadd.f32 %v814, %v686
        %v943 = vadd.f32 %v815, %v687
        %v944 = vadd.f32 %v816, %v688
        %v945 = vadd.f32 %v817, %v689
        %v946 = vadd.f32 %v818, %v690
        %v947 = vadd.f32 %v819, %v691
        %v948 = vadd.f32 %v820, %v692
        %v949 = vadd.f32 %v821, %v693
        %950 = vst [vmem:[#allocation2] sm:$0xff] %v822
        %951 = vst [vmem:[#allocation2 + $0x8] sm:$0xff] %v823
        %952 = vst [vmem:[#allocation2 + $0x10] sm:$0xff] %v824
        %953 = vst [vmem:[#allocation2 + $0x18] sm:$0xff] %v825
        %954 = vst [vmem:[#allocation2 + $0x20] sm:$0xff] %v826
        %955 = vst [vmem:[#allocation2 + $0x28] sm:$0xff] %v827
        %956 = vst [vmem:[#allocation2 + $0x30] sm:$0xff] %v828
        %957 = vst [vmem:[#allocation2 + $0x38] sm:$0xff] %v829
        %958 = vst [vmem:[#allocation2 + $0x40] sm:$0xff] %v830
        %959 = vst [vmem:[#allocation2 + $0x48] sm:$0xff] %v831
        %960 = vst [vmem:[#allocation2 + $0x50] sm:$0xff] %v832
        %961 = vst [vmem:[#allocation2 + $0x58] sm:$0xff] %v833
        %962 = vst [vmem:[#allocation2 + $0x60] sm:$0xff] %v834
        %963 = vst [vmem:[#allocation2 + $0x68] sm:$0xff] %v835
        %964 = vst [vmem:[#allocation2 + $0x70] sm:$0xff] %v836
        %965 = vst [vmem:[#allocation2 + $0x78] sm:$0xff] %v837
        %966 = vst [vmem:[#allocation2 + $0x80] sm:$0xff] %v838
        %967 = vst [vmem:[#allocation2 + $0x88] sm:$0xff] %v839
        %968 = vst [vmem:[#allocation2 + $0x90] sm:$0xff] %v840
        %969 = vst [vmem:[#allocation2 + $0x98] sm:$0xff] %v841
        %970 = vst [vmem:[#allocation2 + $0xa0] sm:$0xff] %v842
        %971 = vst [vmem:[#allocation2 + $0xa8] sm:$0xff] %v843
        %972 = vst [vmem:[#allocation2 + $0xb0] sm:$0xff] %v844
        %973 = vst [vmem:[#allocation2 + $0xb8] sm:$0xff] %v845
        %974 = vst [vmem:[#allocation2 + $0xc0] sm:$0xff] %v846
        %975 = vst [vmem:[#allocation2 + $0xc8] sm:$0xff] %v847
        %976 = vst [vmem:[#allocation2 + $0xd0] sm:$0xff] %v848
        %977 = vst [vmem:[#allocation2 + $0xd8] sm:$0xff] %v849
        %978 = vst [vmem:[#allocation2 + $0xe0] sm:$0xff] %v850
        %979 = vst [vmem:[#allocation2 + $0xe8] sm:$0xff] %v851
        %980 = vst [vmem:[#allocation2 + $0xf0] sm:$0xff] %v852
        %981 = vst [vmem:[#allocation2 + $0xf8] sm:$0xff] %v853
        %982 = vst [vmem:[#allocation2 + $0x100] sm:$0xff] %v854
        %983 = vst [vmem:[#allocation2 + $0x108] sm:$0xff] %v855
        %984 = vst [vmem:[#allocation2 + $0x110] sm:$0xff] %v856
        %985 = vst [vmem:[#allocation2 + $0x118] sm:$0xff] %v857
        %986 = vst [vmem:[#allocation2 + $0x120] sm:$0xff] %v858
        %987 = vst [vmem:[#allocation2 + $0x128] sm:$0xff] %v859
        %988 = vst [vmem:[#allocation2 + $0x130] sm:$0xff] %v860
        %989 = vst [vmem:[#allocation2 + $0x138] sm:$0xff] %v861
        %990 = vst [vmem:[#allocation2 + $0x140] sm:$0xff] %v862
        %991 = vst [vmem:[#allocation2 + $0x148] sm:$0xff] %v863
        %992 = vst [vmem:[#allocation2 + $0x150] sm:$0xff] %v864
        %993 = vst [vmem:[#allocation2 + $0x158] sm:$0xff] %v865
        %994 = vst [vmem:[#allocation2 + $0x160] sm:$0xff] %v866
        %995 = vst [vmem:[#allocation2 + $0x168] sm:$0xff] %v867
        %996 = vst [vmem:[#allocation2 + $0x170] sm:$0xff] %v868
        %997 = vst [vmem:[#allocation2 + $0x178] sm:$0xff] %v869
        %998 = vst [vmem:[#allocation2 + $0x180] sm:$0xff] %v870
        %999 = vst [vmem:[#allocation2 + $0x188] sm:$0xff] %v871
        %1000 = vst [vmem:[#allocation2 + $0x190] sm:$0xff] %v872
        %1001 = vst [vmem:[#allocation2 + $0x198] sm:$0xff] %v873
        %1002 = vst [vmem:[#allocation2 + $0x1a0] sm:$0xff] %v874
        %1003 = vst [vmem:[#allocation2 + $0x1a8] sm:$0xff] %v875
        %1004 = vst [vmem:[#allocation2 + $0x1b0] sm:$0xff] %v876
        %1005 = vst [vmem:[#allocation2 + $0x1b8] sm:$0xff] %v877
        %1006 = vst [vmem:[#allocation2 + $0x1c0] sm:$0xff] %v878
        %1007 = vst [vmem:[#allocation2 + $0x1c8] sm:$0xff] %v879
        %1008 = vst [vmem:[#allocation2 + $0x1d0] sm:$0xff] %v880
        %1009 = vst [vmem:[#allocation2 + $0x1d8] sm:$0xff] %v881
        %1010 = vst [vmem:[#allocation2 + $0x1e0] sm:$0xff] %v882
        %1011 = vst [vmem:[#allocation2 + $0x1e8] sm:$0xff] %v883
        %1012 = vst [vmem:[#allocation2 + $0x1f0] sm:$0xff] %v884
        %1013 = vst [vmem:[#allocation2 + $0x1f8] sm:$0xff] %v885
        %1014 = vst [vmem:[#allocation2 + $0x200] sm:$0xff] %v886
        %1015 = vst [vmem:[#allocation2 + $0x208] sm:$0xff] %v887
        %1016 = vst [vmem:[#allocation2 + $0x210] sm:$0xff] %v888
        %1017 = vst [vmem:[#allocation2 + $0x218] sm:$0xff] %v889
        %1018 = vst [vmem:[#allocation2 + $0x220] sm:$0xff] %v890
        %1019 = vst [vmem:[#allocation2 + $0x228] sm:$0xff] %v891
        %1020 = vst [vmem:[#allocation2 + $0x230] sm:$0xff] %v892
        %1021 = vst [vmem:[#allocation2 + $0x238] sm:$0xff] %v893
        %1022 = vst [vmem:[#allocation2 + $0x240] sm:$0xff] %v894
        %1023 = vst [vmem:[#allocation2 + $0x248] sm:$0xff] %v895
        %1024 = vst [vmem:[#allocation2 + $0x250] sm:$0xff] %v896
        %1025 = vst [vmem:[#allocation2 + $0x258] sm:$0xff] %v897
        %1026 = vst [vmem:[#allocation2 + $0x260] sm:$0xff] %v898
        %1027 = vst [vmem:[#allocation2 + $0x268] sm:$0xff] %v899
        %1028 = vst [vmem:[#allocation2 + $0x270] sm:$0xff] %v900
        %1029 = vst [vmem:[#allocation2 + $0x278] sm:$0xff] %v901
        %1030 = vst [vmem:[#allocation2 + $0x280] sm:$0xff] %v902
        %1031 = vst [vmem:[#allocation2 + $0x288] sm:$0xff] %v903
        %1032 = vst [vmem:[#allocation2 + $0x290] sm:$0xff] %v904
        %1033 = vst [vmem:[#allocation2 + $0x298] sm:$0xff] %v905
        %1034 = vst [vmem:[#allocation2 + $0x2a0] sm:$0xff] %v906
        %1035 = vst [vmem:[#allocation2 + $0x2a8] sm:$0xff] %v907
        %1036 = vst [vmem:[#allocation2 + $0x2b0] sm:$0xff] %v908
        %1037 = vst [vmem:[#allocation2 + $0x2b8] sm:$0xff] %v909
        %1038 = vst [vmem:[#allocation2 + $0x2c0] sm:$0xff] %v910
        %1039 = vst [vmem:[#allocation2 + $0x2c8] sm:$0xff] %v911
        %1040 = vst [vmem:[#allocation2 + $0x2d0] sm:$0xff] %v912
        %1041 = vst [vmem:[#allocation2 + $0x2d8] sm:$0xff] %v913
        %1042 = vst [vmem:[#allocation2 + $0x2e0] sm:$0xff] %v914
        %1043 = vst [vmem:[#allocation2 + $0x2e8] sm:$0xff] %v915
        %1044 = vst [vmem:[#allocation2 + $0x2f0] sm:$0xff] %v916
        %1045 = vst [vmem:[#allocation2 + $0x2f8] sm:$0xff] %v917
        %1046 = vst [vmem:[#allocation2 + $0x300] sm:$0xff] %v918
        %1047 = vst [vmem:[#allocation2 + $0x308] sm:$0xff] %v919
        %1048 = vst [vmem:[#allocation2 + $0x310] sm:$0xff] %v920
        %1049 = vst [vmem:[#allocation2 + $0x318] sm:$0xff] %v921
        %1050 = vst [vmem:[#allocation2 + $0x320] sm:$0xff] %v922
        %1051 = vst [vmem:[#allocation2 + $0x328] sm:$0xff] %v923
        %1052 = vst [vmem:[#allocation2 + $0x330] sm:$0xff] %v924
        %1053 = vst [vmem:[#allocation2 + $0x338] sm:$0xff] %v925
        %1054 = vst [vmem:[#allocation2 + $0x340] sm:$0xff] %v926
        %1055 = vst [vmem:[#allocation2 + $0x348] sm:$0xff] %v927
        %1056 = vst [vmem:[#allocation2 + $0x350] sm:$0xff] %v928
        %1057 = vst [vmem:[#allocation2 + $0x358] sm:$0xff] %v929
        %1058 = vst [vmem:[#allocation2 + $0x360] sm:$0xff] %v930
        %1059 = vst [vmem:[#allocation2 + $0x368] sm:$0xff] %v931
        %1060 = vst [vmem:[#allocation2 + $0x370] sm:$0xff] %v932
        %1061 = vst [vmem:[#allocation2 + $0x378] sm:$0xff] %v933
        %1062 = vst [vmem:[#allocation2 + $0x380] sm:$0xff] %v934
        %1063 = vst [vmem:[#allocation2 + $0x388] sm:$0xff] %v935
        %1064 = vst [vmem:[#allocation2 + $0x390] sm:$0xff] %v936
        %1065 = vst [vmem:[#allocation2 + $0x398] sm:$0xff] %v937
        %1066 = vst [vmem:[#allocation2 + $0x3a0] sm:$0xff] %v938
        %1067 = vst [vmem:[#allocation2 + $0x3a8] sm:$0xff] %v939
        %1068 = vst [vmem:[#allocation2 + $0x3b0] sm:$0xff] %v940
        %1069 = vst [vmem:[#allocation2 + $0x3b8] sm:$0xff] %v941
        %1070 = vst [vmem:[#allocation2 + $0x3c0] sm:$0xff] %v942
        %1071 = vst [vmem:[#allocation2 + $0x3c8] sm:$0xff] %v943
        %1072 = vst [vmem:[#allocation2 + $0x3d0] sm:$0xff] %v944
        %1073 = vst [vmem:[#allocation2 + $0x3d8] sm:$0xff] %v945
        %1074 = vst [vmem:[#allocation2 + $0x3e0] sm:$0xff] %v946
        %1075 = vst [vmem:[#allocation2 + $0x3e8] sm:$0xff] %v947
        %1076 = vst [vmem:[#allocation2 + $0x3f0] sm:$0xff] %v948
        %1077 = vst [vmem:[#allocation2 + $0x3f8] sm:$0xff] %v949
        // Predicated region
        $region33: #{tpu_custom_call.1} parent=23 // pred_check
          %p1078 = pneg %p178
        $region34: #{tpu_custom_call.1} parent=23 // pred_check_branch
          %1080 = sbr.rel (%p1078) target = $region36
        $region35: #{tpu_custom_call.1} parent=23 // pred_region
          %v1081 = vld [vmem:[#allocation2] sm:$0xff]
          %v1082 = vld [vmem:[#allocation2 + $0x8] sm:$0xff]
          %v1083 = vld [vmem:[#allocation2 + $0x10] sm:$0xff]
          %v1084 = vld [vmem:[#allocation2 + $0x18] sm:$0xff]
          %v1085 = vld [vmem:[#allocation2 + $0x20] sm:$0xff]
          %v1086 = vld [vmem:[#allocation2 + $0x28] sm:$0xff]
          %v1087 = vld [vmem:[#allocation2 + $0x30] sm:$0xff]
          %v1088 = vld [vmem:[#allocation2 + $0x38] sm:$0xff]
          %v1089 = vld [vmem:[#allocation2 + $0x40] sm:$0xff]
          %v1090 = vld [vmem:[#allocation2 + $0x48] sm:$0xff]
          %v1091 = vld [vmem:[#allocation2 + $0x50] sm:$0xff]
          %v1092 = vld [vmem:[#allocation2 + $0x58] sm:$0xff]
          %v1093 = vld [vmem:[#allocation2 + $0x60] sm:$0xff]
          %v1094 = vld [vmem:[#allocation2 + $0x68] sm:$0xff]
          %v1095 = vld [vmem:[#allocation2 + $0x70] sm:$0xff]
          %v1096 = vld [vmem:[#allocation2 + $0x78] sm:$0xff]
          %v1097 = vld [vmem:[#allocation2 + $0x80] sm:$0xff]
          %v1098 = vld [vmem:[#allocation2 + $0x88] sm:$0xff]
          %v1099 = vld [vmem:[#allocation2 + $0x90] sm:$0xff]
          %v1100 = vld [vmem:[#allocation2 + $0x98] sm:$0xff]
          %v1101 = vld [vmem:[#allocation2 + $0xa0] sm:$0xff]
          %v1102 = vld [vmem:[#allocation2 + $0xa8] sm:$0xff]
          %v1103 = vld [vmem:[#allocation2 + $0xb0] sm:$0xff]
          %v1104 = vld [vmem:[#allocation2 + $0xb8] sm:$0xff]
          %v1105 = vld [vmem:[#allocation2 + $0xc0] sm:$0xff]
          %v1106 = vld [vmem:[#allocation2 + $0xc8] sm:$0xff]
          %v1107 = vld [vmem:[#allocation2 + $0xd0] sm:$0xff]
          %v1108 = vld [vmem:[#allocation2 + $0xd8] sm:$0xff]
          %v1109 = vld [vmem:[#allocation2 + $0xe0] sm:$0xff]
          %v1110 = vld [vmem:[#allocation2 + $0xe8] sm:$0xff]
          %v1111 = vld [vmem:[#allocation2 + $0xf0] sm:$0xff]
          %v1112 = vld [vmem:[#allocation2 + $0xf8] sm:$0xff]
          %v1113 = vld [vmem:[#allocation2 + $0x100] sm:$0xff]
          %v1114 = vld [vmem:[#allocation2 + $0x108] sm:$0xff]
          %v1115 = vld [vmem:[#allocation2 + $0x110] sm:$0xff]
          %v1116 = vld [vmem:[#allocation2 + $0x118] sm:$0xff]
          %v1117 = vld [vmem:[#allocation2 + $0x120] sm:$0xff]
          %v1118 = vld [vmem:[#allocation2 + $0x128] sm:$0xff]
          %v1119 = vld [vmem:[#allocation2 + $0x130] sm:$0xff]
          %v1120 = vld [vmem:[#allocation2 + $0x138] sm:$0xff]
          %v1121 = vld [vmem:[#allocation2 + $0x140] sm:$0xff]
          %v1122 = vld [vmem:[#allocation2 + $0x148] sm:$0xff]
          %v1123 = vld [vmem:[#allocation2 + $0x150] sm:$0xff]
          %v1124 = vld [vmem:[#allocation2 + $0x158] sm:$0xff]
          %v1125 = vld [vmem:[#allocation2 + $0x160] sm:$0xff]
          %v1126 = vld [vmem:[#allocation2 + $0x168] sm:$0xff]
          %v1127 = vld [vmem:[#allocation2 + $0x170] sm:$0xff]
          %v1128 = vld [vmem:[#allocation2 + $0x178] sm:$0xff]
          %v1129 = vld [vmem:[#allocation2 + $0x180] sm:$0xff]
          %v1130 = vld [vmem:[#allocation2 + $0x188] sm:$0xff]
          %v1131 = vld [vmem:[#allocation2 + $0x190] sm:$0xff]
          %v1132 = vld [vmem:[#allocation2 + $0x198] sm:$0xff]
          %v1133 = vld [vmem:[#allocation2 + $0x1a0] sm:$0xff]
          %v1134 = vld [vmem:[#allocation2 + $0x1a8] sm:$0xff]
          %v1135 = vld [vmem:[#allocation2 + $0x1b0] sm:$0xff]
          %v1136 = vld [vmem:[#allocation2 + $0x1b8] sm:$0xff]
          %v1137 = vld [vmem:[#allocation2 + $0x1c0] sm:$0xff]
          %v1138 = vld [vmem:[#allocation2 + $0x1c8] sm:$0xff]
          %v1139 = vld [vmem:[#allocation2 + $0x1d0] sm:$0xff]
          %v1140 = vld [vmem:[#allocation2 + $0x1d8] sm:$0xff]
          %v1141 = vld [vmem:[#allocation2 + $0x1e0] sm:$0xff]
          %v1142 = vld [vmem:[#allocation2 + $0x1e8] sm:$0xff]
          %v1143 = vld [vmem:[#allocation2 + $0x1f0] sm:$0xff]
          %v1144 = vld [vmem:[#allocation2 + $0x1f8] sm:$0xff]
          %v1145 = vld [vmem:[#allocation2 + $0x200] sm:$0xff]
          %v1146 = vld [vmem:[#allocation2 + $0x208] sm:$0xff]
          %v1147 = vld [vmem:[#allocation2 + $0x210] sm:$0xff]
          %v1148 = vld [vmem:[#allocation2 + $0x218] sm:$0xff]
          %v1149 = vld [vmem:[#allocation2 + $0x220] sm:$0xff]
          %v1150 = vld [vmem:[#allocation2 + $0x228] sm:$0xff]
          %v1151 = vld [vmem:[#allocation2 + $0x230] sm:$0xff]
          %v1152 = vld [vmem:[#allocation2 + $0x238] sm:$0xff]
          %v1153 = vld [vmem:[#allocation2 + $0x240] sm:$0xff]
          %v1154 = vld [vmem:[#allocation2 + $0x248] sm:$0xff]
          %v1155 = vld [vmem:[#allocation2 + $0x250] sm:$0xff]
          %v1156 = vld [vmem:[#allocation2 + $0x258] sm:$0xff]
          %v1157 = vld [vmem:[#allocation2 + $0x260] sm:$0xff]
          %v1158 = vld [vmem:[#allocation2 + $0x268] sm:$0xff]
          %v1159 = vld [vmem:[#allocation2 + $0x270] sm:$0xff]
          %v1160 = vld [vmem:[#allocation2 + $0x278] sm:$0xff]
          %v1161 = vld [vmem:[#allocation2 + $0x280] sm:$0xff]
          %v1162 = vld [vmem:[#allocation2 + $0x288] sm:$0xff]
          %v1163 = vld [vmem:[#allocation2 + $0x290] sm:$0xff]
          %v1164 = vld [vmem:[#allocation2 + $0x298] sm:$0xff]
          %v1165 = vld [vmem:[#allocation2 + $0x2a0] sm:$0xff]
          %v1166 = vld [vmem:[#allocation2 + $0x2a8] sm:$0xff]
          %v1167 = vld [vmem:[#allocation2 + $0x2b0] sm:$0xff]
          %v1168 = vld [vmem:[#allocation2 + $0x2b8] sm:$0xff]
          %v1169 = vld [vmem:[#allocation2 + $0x2c0] sm:$0xff]
          %v1170 = vld [vmem:[#allocation2 + $0x2c8] sm:$0xff]
          %v1171 = vld [vmem:[#allocation2 + $0x2d0] sm:$0xff]
          %v1172 = vld [vmem:[#allocation2 + $0x2d8] sm:$0xff]
          %v1173 = vld [vmem:[#allocation2 + $0x2e0] sm:$0xff]
          %v1174 = vld [vmem:[#allocation2 + $0x2e8] sm:$0xff]
          %v1175 = vld [vmem:[#allocation2 + $0x2f0] sm:$0xff]
          %v1176 = vld [vmem:[#allocation2 + $0x2f8] sm:$0xff]
          %v1177 = vld [vmem:[#allocation2 + $0x300] sm:$0xff]
          %v1178 = vld [vmem:[#allocation2 + $0x308] sm:$0xff]
          %v1179 = vld [vmem:[#allocation2 + $0x310] sm:$0xff]
          %v1180 = vld [vmem:[#allocation2 + $0x318] sm:$0xff]
          %v1181 = vld [vmem:[#allocation2 + $0x320] sm:$0xff]
          %v1182 = vld [vmem:[#allocation2 + $0x328] sm:$0xff]
          %v1183 = vld [vmem:[#allocation2 + $0x330] sm:$0xff]
          %v1184 = vld [vmem:[#allocation2 + $0x338] sm:$0xff]
          %v1185 = vld [vmem:[#allocation2 + $0x340] sm:$0xff]
          %v1186 = vld [vmem:[#allocation2 + $0x348] sm:$0xff]
          %v1187 = vld [vmem:[#allocation2 + $0x350] sm:$0xff]
          %v1188 = vld [vmem:[#allocation2 + $0x358] sm:$0xff]
          %v1189 = vld [vmem:[#allocation2 + $0x360] sm:$0xff]
          %v1190 = vld [vmem:[#allocation2 + $0x368] sm:$0xff]
          %v1191 = vld [vmem:[#allocation2 + $0x370] sm:$0xff]
          %v1192 = vld [vmem:[#allocation2 + $0x378] sm:$0xff]
          %v1193 = vld [vmem:[#allocation2 + $0x380] sm:$0xff]
          %v1194 = vld [vmem:[#allocation2 + $0x388] sm:$0xff]
          %v1195 = vld [vmem:[#allocation2 + $0x390] sm:$0xff]
          %v1196 = vld [vmem:[#allocation2 + $0x398] sm:$0xff]
          %v1197 = vld [vmem:[#allocation2 + $0x3a0] sm:$0xff]
          %v1198 = vld [vmem:[#allocation2 + $0x3a8] sm:$0xff]
          %v1199 = vld [vmem:[#allocation2 + $0x3b0] sm:$0xff]
          %v1200 = vld [vmem:[#allocation2 + $0x3b8] sm:$0xff]
          %v1201 = vld [vmem:[#allocation2 + $0x3c0] sm:$0xff]
          %v1202 = vld [vmem:[#allocation2 + $0x3c8] sm:$0xff]
          %v1203 = vld [vmem:[#allocation2 + $0x3d0] sm:$0xff]
          %v1204 = vld [vmem:[#allocation2 + $0x3d8] sm:$0xff]
          %v1205 = vld [vmem:[#allocation2 + $0x3e0] sm:$0xff]
          %v1206 = vld [vmem:[#allocation2 + $0x3e8] sm:$0xff]
          %v1207 = vld [vmem:[#allocation2 + $0x3f0] sm:$0xff]
          %v1208 = vld [vmem:[#allocation2 + $0x3f8] sm:$0xff]
          %1209 = vadd.xlane.f32.xlu0 %v1081
          %v1210 = vpop.xlane.xlu0 %1209
          %1211 = vadd.xlane.f32.xlu0 %v1082
          %v1212 = vpop.xlane.xlu0 %1211
          %1213 = vadd.xlane.f32.xlu0 %v1083
          %v1214 = vpop.xlane.xlu0 %1213
          %1215 = vadd.xlane.f32.xlu0 %v1084
          %v1216 = vpop.xlane.xlu0 %1215
          %1217 = vadd.xlane.f32.xlu0 %v1085
          %v1218 = vpop.xlane.xlu0 %1217
          %1219 = vadd.xlane.f32.xlu0 %v1086
          %v1220 = vpop.xlane.xlu0 %1219
          %1221 = vadd.xlane.f32.xlu0 %v1087
          %v1222 = vpop.xlane.xlu0 %1221
          %1223 = vadd.xlane.f32.xlu0 %v1088
          %v1224 = vpop.xlane.xlu0 %1223
          %1225 = vadd.xlane.f32.xlu0 %v1089
          %v1226 = vpop.xlane.xlu0 %1225
          %1227 = vadd.xlane.f32.xlu0 %v1090
          %v1228 = vpop.xlane.xlu0 %1227
          %1229 = vadd.xlane.f32.xlu0 %v1091
          %v1230 = vpop.xlane.xlu0 %1229
          %1231 = vadd.xlane.f32.xlu0 %v1092
          %v1232 = vpop.xlane.xlu0 %1231
          %1233 = vadd.xlane.f32.xlu0 %v1093
          %v1234 = vpop.xlane.xlu0 %1233
          %1235 = vadd.xlane.f32.xlu0 %v1094
          %v1236 = vpop.xlane.xlu0 %1235
          %1237 = vadd.xlane.f32.xlu0 %v1095
          %v1238 = vpop.xlane.xlu0 %1237
          %1239 = vadd.xlane.f32.xlu0 %v1096
          %v1240 = vpop.xlane.xlu0 %1239
          %1241 = vadd.xlane.f32.xlu0 %v1097
          %v1242 = vpop.xlane.xlu0 %1241
          %1243 = vadd.xlane.f32.xlu0 %v1098
          %v1244 = vpop.xlane.xlu0 %1243
          %1245 = vadd.xlane.f32.xlu0 %v1099
          %v1246 = vpop.xlane.xlu0 %1245
          %1247 = vadd.xlane.f32.xlu0 %v1100
          %v1248 = vpop.xlane.xlu0 %1247
          %1249 = vadd.xlane.f32.xlu0 %v1101
          %v1250 = vpop.xlane.xlu0 %1249
          %1251 = vadd.xlane.f32.xlu0 %v1102
          %v1252 = vpop.xlane.xlu0 %1251
          %1253 = vadd.xlane.f32.xlu0 %v1103
          %v1254 = vpop.xlane.xlu0 %1253
          %1255 = vadd.xlane.f32.xlu0 %v1104
          %v1256 = vpop.xlane.xlu0 %1255
          %1257 = vadd.xlane.f32.xlu0 %v1105
          %v1258 = vpop.xlane.xlu0 %1257
          %1259 = vadd.xlane.f32.xlu0 %v1106
          %v1260 = vpop.xlane.xlu0 %1259
          %1261 = vadd.xlane.f32.xlu0 %v1107
          %v1262 = vpop.xlane.xlu0 %1261
          %1263 = vadd.xlane.f32.xlu0 %v1108
          %v1264 = vpop.xlane.xlu0 %1263
          %1265 = vadd.xlane.f32.xlu0 %v1109
          %v1266 = vpop.xlane.xlu0 %1265
          %1267 = vadd.xlane.f32.xlu0 %v1110
          %v1268 = vpop.xlane.xlu0 %1267
          %1269 = vadd.xlane.f32.xlu0 %v1111
          %v1270 = vpop.xlane.xlu0 %1269
          %1271 = vadd.xlane.f32.xlu0 %v1112
          %v1272 = vpop.xlane.xlu0 %1271
          %1273 = vadd.xlane.f32.xlu0 %v1113
          %v1274 = vpop.xlane.xlu0 %1273
          %1275 = vadd.xlane.f32.xlu0 %v1114
          %v1276 = vpop.xlane.xlu0 %1275
          %1277 = vadd.xlane.f32.xlu0 %v1115
          %v1278 = vpop.xlane.xlu0 %1277
          %1279 = vadd.xlane.f32.xlu0 %v1116
          %v1280 = vpop.xlane.xlu0 %1279
          %1281 = vadd.xlane.f32.xlu0 %v1117
          %v1282 = vpop.xlane.xlu0 %1281
          %1283 = vadd.xlane.f32.xlu0 %v1118
          %v1284 = vpop.xlane.xlu0 %1283
          %1285 = vadd.xlane.f32.xlu0 %v1119
          %v1286 = vpop.xlane.xlu0 %1285
          %1287 = vadd.xlane.f32.xlu0 %v1120
          %v1288 = vpop.xlane.xlu0 %1287
          %1289 = vadd.xlane.f32.xlu0 %v1121
          %v1290 = vpop.xlane.xlu0 %1289
          %1291 = vadd.xlane.f32.xlu0 %v1122
          %v1292 = vpop.xlane.xlu0 %1291
          %1293 = vadd.xlane.f32.xlu0 %v1123
          %v1294 = vpop.xlane.xlu0 %1293
          %1295 = vadd.xlane.f32.xlu0 %v1124
          %v1296 = vpop.xlane.xlu0 %1295
          %1297 = vadd.xlane.f32.xlu0 %v1125
          %v1298 = vpop.xlane.xlu0 %1297
          %1299 = vadd.xlane.f32.xlu0 %v1126
          %v1300 = vpop.xlane.xlu0 %1299
          %1301 = vadd.xlane.f32.xlu0 %v1127
          %v1302 = vpop.xlane.xlu0 %1301
          %1303 = vadd.xlane.f32.xlu0 %v1128
          %v1304 = vpop.xlane.xlu0 %1303
          %1305 = vadd.xlane.f32.xlu0 %v1129
          %v1306 = vpop.xlane.xlu0 %1305
          %1307 = vadd.xlane.f32.xlu0 %v1130
          %v1308 = vpop.xlane.xlu0 %1307
          %1309 = vadd.xlane.f32.xlu0 %v1131
          %v1310 = vpop.xlane.xlu0 %1309
          %1311 = vadd.xlane.f32.xlu0 %v1132
          %v1312 = vpop.xlane.xlu0 %1311
          %1313 = vadd.xlane.f32.xlu0 %v1133
          %v1314 = vpop.xlane.xlu0 %1313
          %1315 = vadd.xlane.f32.xlu0 %v1134
          %v1316 = vpop.xlane.xlu0 %1315
          %1317 = vadd.xlane.f32.xlu0 %v1135
          %v1318 = vpop.xlane.xlu0 %1317
          %1319 = vadd.xlane.f32.xlu0 %v1136
          %v1320 = vpop.xlane.xlu0 %1319
          %1321 = vadd.xlane.f32.xlu0 %v1137
          %v1322 = vpop.xlane.xlu0 %1321
          %1323 = vadd.xlane.f32.xlu0 %v1138
          %v1324 = vpop.xlane.xlu0 %1323
          %1325 = vadd.xlane.f32.xlu0 %v1139
          %v1326 = vpop.xlane.xlu0 %1325
          %1327 = vadd.xlane.f32.xlu0 %v1140
          %v1328 = vpop.xlane.xlu0 %1327
          %1329 = vadd.xlane.f32.xlu0 %v1141
          %v1330 = vpop.xlane.xlu0 %1329
          %1331 = vadd.xlane.f32.xlu0 %v1142
          %v1332 = vpop.xlane.xlu0 %1331
          %1333 = vadd.xlane.f32.xlu0 %v1143
          %v1334 = vpop.xlane.xlu0 %1333
          %1335 = vadd.xlane.f32.xlu0 %v1144
          %v1336 = vpop.xlane.xlu0 %1335
          %1337 = vadd.xlane.f32.xlu0 %v1145
          %v1338 = vpop.xlane.xlu0 %1337
          %1339 = vadd.xlane.f32.xlu0 %v1146
          %v1340 = vpop.xlane.xlu0 %1339
          %1341 = vadd.xlane.f32.xlu0 %v1147
          %v1342 = vpop.xlane.xlu0 %1341
          %1343 = vadd.xlane.f32.xlu0 %v1148
          %v1344 = vpop.xlane.xlu0 %1343
          %1345 = vadd.xlane.f32.xlu0 %v1149
          %v1346 = vpop.xlane.xlu0 %1345
          %1347 = vadd.xlane.f32.xlu0 %v1150
          %v1348 = vpop.xlane.xlu0 %1347
          %1349 = vadd.xlane.f32.xlu0 %v1151
          %v1350 = vpop.xlane.xlu0 %1349
          %1351 = vadd.xlane.f32.xlu0 %v1152
          %v1352 = vpop.xlane.xlu0 %1351
          %1353 = vadd.xlane.f32.xlu0 %v1153
          %v1354 = vpop.xlane.xlu0 %1353
          %1355 = vadd.xlane.f32.xlu0 %v1154
          %v1356 = vpop.xlane.xlu0 %1355
          %1357 = vadd.xlane.f32.xlu0 %v1155
          %v1358 = vpop.xlane.xlu0 %1357
          %1359 = vadd.xlane.f32.xlu0 %v1156
          %v1360 = vpop.xlane.xlu0 %1359
          %1361 = vadd.xlane.f32.xlu0 %v1157
          %v1362 = vpop.xlane.xlu0 %1361
          %1363 = vadd.xlane.f32.xlu0 %v1158
          %v1364 = vpop.xlane.xlu0 %1363
          %1365 = vadd.xlane.f32.xlu0 %v1159
          %v1366 = vpop.xlane.xlu0 %1365
          %1367 = vadd.xlane.f32.xlu0 %v1160
          %v1368 = vpop.xlane.xlu0 %1367
          %1369 = vadd.xlane.f32.xlu0 %v1161
          %v1370 = vpop.xlane.xlu0 %1369
          %1371 = vadd.xlane.f32.xlu0 %v1162
          %v1372 = vpop.xlane.xlu0 %1371
          %1373 = vadd.xlane.f32.xlu0 %v1163
          %v1374 = vpop.xlane.xlu0 %1373
          %1375 = vadd.xlane.f32.xlu0 %v1164
          %v1376 = vpop.xlane.xlu0 %1375
          %1377 = vadd.xlane.f32.xlu0 %v1165
          %v1378 = vpop.xlane.xlu0 %1377
          %1379 = vadd.xlane.f32.xlu0 %v1166
          %v1380 = vpop.xlane.xlu0 %1379
          %1381 = vadd.xlane.f32.xlu0 %v1167
          %v1382 = vpop.xlane.xlu0 %1381
          %1383 = vadd.xlane.f32.xlu0 %v1168
          %v1384 = vpop.xlane.xlu0 %1383
          %1385 = vadd.xlane.f32.xlu0 %v1169
          %v1386 = vpop.xlane.xlu0 %1385
          %1387 = vadd.xlane.f32.xlu0 %v1170
          %v1388 = vpop.xlane.xlu0 %1387
          %1389 = vadd.xlane.f32.xlu0 %v1171
          %v1390 = vpop.xlane.xlu0 %1389
          %1391 = vadd.xlane.f32.xlu0 %v1172
          %v1392 = vpop.xlane.xlu0 %1391
          %1393 = vadd.xlane.f32.xlu0 %v1173
          %v1394 = vpop.xlane.xlu0 %1393
          %1395 = vadd.xlane.f32.xlu0 %v1174
          %v1396 = vpop.xlane.xlu0 %1395
          %1397 = vadd.xlane.f32.xlu0 %v1175
          %v1398 = vpop.xlane.xlu0 %1397
          %1399 = vadd.xlane.f32.xlu0 %v1176
          %v1400 = vpop.xlane.xlu0 %1399
          %1401 = vadd.xlane.f32.xlu0 %v1177
          %v1402 = vpop.xlane.xlu0 %1401
          %1403 = vadd.xlane.f32.xlu0 %v1178
          %v1404 = vpop.xlane.xlu0 %1403
          %1405 = vadd.xlane.f32.xlu0 %v1179
          %v1406 = vpop.xlane.xlu0 %1405
          %1407 = vadd.xlane.f32.xlu0 %v1180
          %v1408 = vpop.xlane.xlu0 %1407
          %1409 = vadd.xlane.f32.xlu0 %v1181
          %v1410 = vpop.xlane.xlu0 %1409
          %1411 = vadd.xlane.f32.xlu0 %v1182
          %v1412 = vpop.xlane.xlu0 %1411
          %1413 = vadd.xlane.f32.xlu0 %v1183
          %v1414 = vpop.xlane.xlu0 %1413
          %1415 = vadd.xlane.f32.xlu0 %v1184
          %v1416 = vpop.xlane.xlu0 %1415
          %1417 = vadd.xlane.f32.xlu0 %v1185
          %v1418 = vpop.xlane.xlu0 %1417
          %1419 = vadd.xlane.f32.xlu0 %v1186
          %v1420 = vpop.xlane.xlu0 %1419
          %1421 = vadd.xlane.f32.xlu0 %v1187
          %v1422 = vpop.xlane.xlu0 %1421
          %1423 = vadd.xlane.f32.xlu0 %v1188
          %v1424 = vpop.xlane.xlu0 %1423
          %1425 = vadd.xlane.f32.xlu0 %v1189
          %v1426 = vpop.xlane.xlu0 %1425
          %1427 = vadd.xlane.f32.xlu0 %v1190
          %v1428 = vpop.xlane.xlu0 %1427
          %1429 = vadd.xlane.f32.xlu0 %v1191
          %v1430 = vpop.xlane.xlu0 %1429
          %1431 = vadd.xlane.f32.xlu0 %v1192
          %v1432 = vpop.xlane.xlu0 %1431
          %1433 = vadd.xlane.f32.xlu0 %v1193
          %v1434 = vpop.xlane.xlu0 %1433
          %1435 = vadd.xlane.f32.xlu0 %v1194
          %v1436 = vpop.xlane.xlu0 %1435
          %1437 = vadd.xlane.f32.xlu0 %v1195
          %v1438 = vpop.xlane.xlu0 %1437
          %1439 = vadd.xlane.f32.xlu0 %v1196
          %v1440 = vpop.xlane.xlu0 %1439
          %1441 = vadd.xlane.f32.xlu0 %v1197
          %v1442 = vpop.xlane.xlu0 %1441
          %1443 = vadd.xlane.f32.xlu0 %v1198
          %v1444 = vpop.xlane.xlu0 %1443
          %1445 = vadd.xlane.f32.xlu0 %v1199
          %v1446 = vpop.xlane.xlu0 %1445
          %1447 = vadd.xlane.f32.xlu0 %v1200
          %v1448 = vpop.xlane.xlu0 %1447
          %1449 = vadd.xlane.f32.xlu0 %v1201
          %v1450 = vpop.xlane.xlu0 %1449
          %1451 = vadd.xlane.f32.xlu0 %v1202
          %v1452 = vpop.xlane.xlu0 %1451
          %1453 = vadd.xlane.f32.xlu0 %v1203
          %v1454 = vpop.xlane.xlu0 %1453
          %1455 = vadd.xlane.f32.xlu0 %v1204
          %v1456 = vpop.xlane.xlu0 %1455
          %1457 = vadd.xlane.f32.xlu0 %v1205
          %v1458 = vpop.xlane.xlu0 %1457
          %1459 = vadd.xlane.f32.xlu0 %v1206
          %v1460 = vpop.xlane.xlu0 %1459
          %1461 = vadd.xlane.f32.xlu0 %v1207
          %v1462 = vpop.xlane.xlu0 %1461
          %1463 = vadd.xlane.f32.xlu0 %v1208
          %v1464 = vpop.xlane.xlu0 %1463
          %vm1465 = vcmask 7168
          %1466 = vst.msk [vmem:[%s176] sm:$0xff] %vm1465, %v1210
          %1467 = vst.msk [vmem:[%s176 + $0x8] sm:$0xff] %vm1465, %v1212
          %1468 = vst.msk [vmem:[%s176 + $0x10] sm:$0xff] %vm1465, %v1214
          %1469 = vst.msk [vmem:[%s176 + $0x18] sm:$0xff] %vm1465, %v1216
          %1470 = vst.msk [vmem:[%s176 + $0x20] sm:$0xff] %vm1465, %v1218
          %1471 = vst.msk [vmem:[%s176 + $0x28] sm:$0xff] %vm1465, %v1220
          %1472 = vst.msk [vmem:[%s176 + $0x30] sm:$0xff] %vm1465, %v1222
          %1473 = vst.msk [vmem:[%s176 + $0x38] sm:$0xff] %vm1465, %v1224
          %1474 = vst.msk [vmem:[%s176 + $0x40] sm:$0xff] %vm1465, %v1226
          %1475 = vst.msk [vmem:[%s176 + $0x48] sm:$0xff] %vm1465, %v1228
          %1476 = vst.msk [vmem:[%s176 + $0x50] sm:$0xff] %vm1465, %v1230
          %1477 = vst.msk [vmem:[%s176 + $0x58] sm:$0xff] %vm1465, %v1232
          %1478 = vst.msk [vmem:[%s176 + $0x60] sm:$0xff] %vm1465, %v1234
          %1479 = vst.msk [vmem:[%s176 + $0x68] sm:$0xff] %vm1465, %v1236
          %1480 = vst.msk [vmem:[%s176 + $0x70] sm:$0xff] %vm1465, %v1238
          %1481 = vst.msk [vmem:[%s176 + $0x78] sm:$0xff] %vm1465, %v1240
          %1482 = vst.msk [vmem:[%s176 + $0x80] sm:$0xff] %vm1465, %v1242
          %1483 = vst.msk [vmem:[%s176 + $0x88] sm:$0xff] %vm1465, %v1244
          %1484 = vst.msk [vmem:[%s176 + $0x90] sm:$0xff] %vm1465, %v1246
          %1485 = vst.msk [vmem:[%s176 + $0x98] sm:$0xff] %vm1465, %v1248
          %1486 = vst.msk [vmem:[%s176 + $0xa0] sm:$0xff] %vm1465, %v1250
          %1487 = vst.msk [vmem:[%s176 + $0xa8] sm:$0xff] %vm1465, %v1252
          %1488 = vst.msk [vmem:[%s176 + $0xb0] sm:$0xff] %vm1465, %v1254
          %1489 = vst.msk [vmem:[%s176 + $0xb8] sm:$0xff] %vm1465, %v1256
          %1490 = vst.msk [vmem:[%s176 + $0xc0] sm:$0xff] %vm1465, %v1258
          %1491 = vst.msk [vmem:[%s176 + $0xc8] sm:$0xff] %vm1465, %v1260
          %1492 = vst.msk [vmem:[%s176 + $0xd0] sm:$0xff] %vm1465, %v1262
          %1493 = vst.msk [vmem:[%s176 + $0xd8] sm:$0xff] %vm1465, %v1264
          %1494 = vst.msk [vmem:[%s176 + $0xe0] sm:$0xff] %vm1465, %v1266
          %1495 = vst.msk [vmem:[%s176 + $0xe8] sm:$0xff] %vm1465, %v1268
          %1496 = vst.msk [vmem:[%s176 + $0xf0] sm:$0xff] %vm1465, %v1270
          %1497 = vst.msk [vmem:[%s176 + $0xf8] sm:$0xff] %vm1465, %v1272
          %1498 = vst.msk [vmem:[%s176 + $0x100] sm:$0xff] %vm1465, %v1274
          %1499 = vst.msk [vmem:[%s176 + $0x108] sm:$0xff] %vm1465, %v1276
          %1500 = vst.msk [vmem:[%s176 + $0x110] sm:$0xff] %vm1465, %v1278
          %1501 = vst.msk [vmem:[%s176 + $0x118] sm:$0xff] %vm1465, %v1280
          %1502 = vst.msk [vmem:[%s176 + $0x120] sm:$0xff] %vm1465, %v1282
          %1503 = vst.msk [vmem:[%s176 + $0x128] sm:$0xff] %vm1465, %v1284
          %1504 = vst.msk [vmem:[%s176 + $0x130] sm:$0xff] %vm1465, %v1286
          %1505 = vst.msk [vmem:[%s176 + $0x138] sm:$0xff] %vm1465, %v1288
          %1506 = vst.msk [vmem:[%s176 + $0x140] sm:$0xff] %vm1465, %v1290
          %1507 = vst.msk [vmem:[%s176 + $0x148] sm:$0xff] %vm1465, %v1292
          %1508 = vst.msk [vmem:[%s176 + $0x150] sm:$0xff] %vm1465, %v1294
          %1509 = vst.msk [vmem:[%s176 + $0x158] sm:$0xff] %vm1465, %v1296
          %1510 = vst.msk [vmem:[%s176 + $0x160] sm:$0xff] %vm1465, %v1298
          %1511 = vst.msk [vmem:[%s176 + $0x168] sm:$0xff] %vm1465, %v1300
          %1512 = vst.msk [vmem:[%s176 + $0x170] sm:$0xff] %vm1465, %v1302
          %1513 = vst.msk [vmem:[%s176 + $0x178] sm:$0xff] %vm1465, %v1304
          %1514 = vst.msk [vmem:[%s176 + $0x180] sm:$0xff] %vm1465, %v1306
          %1515 = vst.msk [vmem:[%s176 + $0x188] sm:$0xff] %vm1465, %v1308
          %1516 = vst.msk [vmem:[%s176 + $0x190] sm:$0xff] %vm1465, %v1310
          %1517 = vst.msk [vmem:[%s176 + $0x198] sm:$0xff] %vm1465, %v1312
          %1518 = vst.msk [vmem:[%s176 + $0x1a0] sm:$0xff] %vm1465, %v1314
          %1519 = vst.msk [vmem:[%s176 + $0x1a8] sm:$0xff] %vm1465, %v1316
          %1520 = vst.msk [vmem:[%s176 + $0x1b0] sm:$0xff] %vm1465, %v1318
          %1521 = vst.msk [vmem:[%s176 + $0x1b8] sm:$0xff] %vm1465, %v1320
          %1522 = vst.msk [vmem:[%s176 + $0x1c0] sm:$0xff] %vm1465, %v1322
          %1523 = vst.msk [vmem:[%s176 + $0x1c8] sm:$0xff] %vm1465, %v1324
          %1524 = vst.msk [vmem:[%s176 + $0x1d0] sm:$0xff] %vm1465, %v1326
          %1525 = vst.msk [vmem:[%s176 + $0x1d8] sm:$0xff] %vm1465, %v1328
          %1526 = vst.msk [vmem:[%s176 + $0x1e0] sm:$0xff] %vm1465, %v1330
          %1527 = vst.msk [vmem:[%s176 + $0x1e8] sm:$0xff] %vm1465, %v1332
          %1528 = vst.msk [vmem:[%s176 + $0x1f0] sm:$0xff] %vm1465, %v1334
          %1529 = vst.msk [vmem:[%s176 + $0x1f8] sm:$0xff] %vm1465, %v1336
          %1530 = vst.msk [vmem:[%s176 + $0x200] sm:$0xff] %vm1465, %v1338
          %1531 = vst.msk [vmem:[%s176 + $0x208] sm:$0xff] %vm1465, %v1340
          %1532 = vst.msk [vmem:[%s176 + $0x210] sm:$0xff] %vm1465, %v1342
          %1533 = vst.msk [vmem:[%s176 + $0x218] sm:$0xff] %vm1465, %v1344
          %1534 = vst.msk [vmem:[%s176 + $0x220] sm:$0xff] %vm1465, %v1346
          %1535 = vst.msk [vmem:[%s176 + $0x228] sm:$0xff] %vm1465, %v1348
          %1536 = vst.msk [vmem:[%s176 + $0x230] sm:$0xff] %vm1465, %v1350
          %1537 = vst.msk [vmem:[%s176 + $0x238] sm:$0xff] %vm1465, %v1352
          %1538 = vst.msk [vmem:[%s176 + $0x240] sm:$0xff] %vm1465, %v1354
          %1539 = vst.msk [vmem:[%s176 + $0x248] sm:$0xff] %vm1465, %v1356
          %1540 = vst.msk [vmem:[%s176 + $0x250] sm:$0xff] %vm1465, %v1358
          %1541 = vst.msk [vmem:[%s176 + $0x258] sm:$0xff] %vm1465, %v1360
          %1542 = vst.msk [vmem:[%s176 + $0x260] sm:$0xff] %vm1465, %v1362
          %1543 = vst.msk [vmem:[%s176 + $0x268] sm:$0xff] %vm1465, %v1364
          %1544 = vst.msk [vmem:[%s176 + $0x270] sm:$0xff] %vm1465, %v1366
          %1545 = vst.msk [vmem:[%s176 + $0x278] sm:$0xff] %vm1465, %v1368
          %1546 = vst.msk [vmem:[%s176 + $0x280] sm:$0xff] %vm1465, %v1370
          %1547 = vst.msk [vmem:[%s176 + $0x288] sm:$0xff] %vm1465, %v1372
          %1548 = vst.msk [vmem:[%s176 + $0x290] sm:$0xff] %vm1465, %v1374
          %1549 = vst.msk [vmem:[%s176 + $0x298] sm:$0xff] %vm1465, %v1376
          %1550 = vst.msk [vmem:[%s176 + $0x2a0] sm:$0xff] %vm1465, %v1378
          %1551 = vst.msk [vmem:[%s176 + $0x2a8] sm:$0xff] %vm1465, %v1380
          %1552 = vst.msk [vmem:[%s176 + $0x2b0] sm:$0xff] %vm1465, %v1382
          %1553 = vst.msk [vmem:[%s176 + $0x2b8] sm:$0xff] %vm1465, %v1384
          %1554 = vst.msk [vmem:[%s176 + $0x2c0] sm:$0xff] %vm1465, %v1386
          %1555 = vst.msk [vmem:[%s176 + $0x2c8] sm:$0xff] %vm1465, %v1388
          %1556 = vst.msk [vmem:[%s176 + $0x2d0] sm:$0xff] %vm1465, %v1390
          %1557 = vst.msk [vmem:[%s176 + $0x2d8] sm:$0xff] %vm1465, %v1392
          %1558 = vst.msk [vmem:[%s176 + $0x2e0] sm:$0xff] %vm1465, %v1394
          %1559 = vst.msk [vmem:[%s176 + $0x2e8] sm:$0xff] %vm1465, %v1396
          %1560 = vst.msk [vmem:[%s176 + $0x2f0] sm:$0xff] %vm1465, %v1398
          %1561 = vst.msk [vmem:[%s176 + $0x2f8] sm:$0xff] %vm1465, %v1400
          %1562 = vst.msk [vmem:[%s176 + $0x300] sm:$0xff] %vm1465, %v1402
          %1563 = vst.msk [vmem:[%s176 + $0x308] sm:$0xff] %vm1465, %v1404
          %1564 = vst.msk [vmem:[%s176 + $0x310] sm:$0xff] %vm1465, %v1406
          %1565 = vst.msk [vmem:[%s176 + $0x318] sm:$0xff] %vm1465, %v1408
          %1566 = vst.msk [vmem:[%s176 + $0x320] sm:$0xff] %vm1465, %v1410
          %1567 = vst.msk [vmem:[%s176 + $0x328] sm:$0xff] %vm1465, %v1412
          %1568 = vst.msk [vmem:[%s176 + $0x330] sm:$0xff] %vm1465, %v1414
          %1569 = vst.msk [vmem:[%s176 + $0x338] sm:$0xff] %vm1465, %v1416
          %1570 = vst.msk [vmem:[%s176 + $0x340] sm:$0xff] %vm1465, %v1418
          %1571 = vst.msk [vmem:[%s176 + $0x348] sm:$0xff] %vm1465, %v1420
          %1572 = vst.msk [vmem:[%s176 + $0x350] sm:$0xff] %vm1465, %v1422
          %1573 = vst.msk [vmem:[%s176 + $0x358] sm:$0xff] %vm1465, %v1424
          %1574 = vst.msk [vmem:[%s176 + $0x360] sm:$0xff] %vm1465, %v1426
          %1575 = vst.msk [vmem:[%s176 + $0x368] sm:$0xff] %vm1465, %v1428
          %1576 = vst.msk [vmem:[%s176 + $0x370] sm:$0xff] %vm1465, %v1430
          %1577 = vst.msk [vmem:[%s176 + $0x378] sm:$0xff] %vm1465, %v1432
          %1578 = vst.msk [vmem:[%s176 + $0x380] sm:$0xff] %vm1465, %v1434
          %1579 = vst.msk [vmem:[%s176 + $0x388] sm:$0xff] %vm1465, %v1436
          %1580 = vst.msk [vmem:[%s176 + $0x390] sm:$0xff] %vm1465, %v1438
          %1581 = vst.msk [vmem:[%s176 + $0x398] sm:$0xff] %vm1465, %v1440
          %1582 = vst.msk [vmem:[%s176 + $0x3a0] sm:$0xff] %vm1465, %v1442
          %1583 = vst.msk [vmem:[%s176 + $0x3a8] sm:$0xff] %vm1465, %v1444
          %1584 = vst.msk [vmem:[%s176 + $0x3b0] sm:$0xff] %vm1465, %v1446
          %1585 = vst.msk [vmem:[%s176 + $0x3b8] sm:$0xff] %vm1465, %v1448
          %1586 = vst.msk [vmem:[%s176 + $0x3c0] sm:$0xff] %vm1465, %v1450
          %1587 = vst.msk [vmem:[%s176 + $0x3c8] sm:$0xff] %vm1465, %v1452
          %1588 = vst.msk [vmem:[%s176 + $0x3d0] sm:$0xff] %vm1465, %v1454
          %1589 = vst.msk [vmem:[%s176 + $0x3d8] sm:$0xff] %vm1465, %v1456
          %1590 = vst.msk [vmem:[%s176 + $0x3e0] sm:$0xff] %vm1465, %v1458
          %1591 = vst.msk [vmem:[%s176 + $0x3e8] sm:$0xff] %vm1465, %v1460
          %1592 = vst.msk [vmem:[%s176 + $0x3f0] sm:$0xff] %vm1465, %v1462
          %1593 = vst.msk [vmem:[%s176 + $0x3f8] sm:$0xff] %vm1465, %v1464
        $region36: #{tpu_custom_call.1} parent=23 // pred_fallthru
          _
        %s1594 = smul.u32 128, %s21
        %p1595 = scmp.lt.s32.totalorder %s20, 1
        %s1596 = scalar_select %p1595, %s20, 1
        %p1597 = scmp.lt.s32.totalorder %s1594, 255
        %s1598 = scalar_select %p1597, %s1594, 255
        %s1599 = smul.addr %s1596, 256
        %s1600 = sadd.s32 %s1598, %s1599
        %s1601 = smul.addr %s1600, 8
        %s1602 = scalar_lea.vmem %s1, %s1601
        // Predicated region
        $region37: #{tpu_custom_call.1} parent=23 // pred_check
          %p1603 = pneg %p84
        $region38: #{tpu_custom_call.1} parent=23 // pred_check_branch
          %1605 = sbr.rel (%p1603) target = $region40
        $region39: #{tpu_custom_call.1} parent=23 // pred_region
          %s1606 = smul.u32 128, %s21
        $region40: #{tpu_custom_call.1} parent=23 // pred_fallthru
          _
      $region24: #{tpu_custom_call.1} parent=5 // pred_fallthru
        _
      %p1607 = scmp.le.s32.totalorder 2, %s10
      // Predicated region
      $region41: #{tpu_custom_call.1} parent=5 // pred_check
        %p1608 = pneg %p1607
      $region42: #{tpu_custom_call.1} parent=5 // pred_check_branch
        %1610 = sbr.rel (%p1608) target = $region44
      $region43: #{tpu_custom_call.1} parent=5 // pred_region
        %s1611 = ssub.s32 %s10, 2
        // Predicated region
        $region45: #{tpu_custom_call.1} parent=43 // pred_check
          %p1612 = pneg %p90
        $region46: #{tpu_custom_call.1} parent=43 // pred_check_branch
          %1614 = sbr.rel (%p1612) target = $region48
        $region47: #{tpu_custom_call.1} parent=43 // pred_region
          %s1615 = smul.u32 128, %s24
          %p1616 = scmp.lt.s32.totalorder %s23, 1
          %s1617 = scalar_select %p1616, %s23, 1
          %p1618 = scmp.lt.s32.totalorder %s1615, 255
          %s1619 = scalar_select %p1618, %s1615, 255
          %s1620 = smul.addr %s1617, 256
          %s1621 = sadd.s32 %s1619, %s1620
          %s1622 = smul.addr %s1621, 8
          %s1623 = scalar_lea.vmem %s1, %s1622
        $region48: #{tpu_custom_call.1} parent=43 // pred_fallthru
          _
      $region44: #{tpu_custom_call.1} parent=5 // pred_fallthru
        _
    $region6: #{tpu_custom_call.1} parent=1 // loop_footer
      %s14 = sadd.s32 1, %s10
    $region7: #{tpu_custom_call.1} parent=1 // loop_footer_branch
      %9 = sbr.rel target = $region3
    $region8: #{tpu_custom_call.1} parent=1 // loop_exit
      _
    %1624 = vsyncpa [#allocation4], 1
    %s1625 = scalar_lea.sflag [#allocation4], 1
    %1626 = vsyncpa %s1625, 1

</llo_original>
